<compile_context>
chip_gen: v5e
topology: v5e:2x2
jax: 0.10.0
libtpu: 0.0.40
codegen_flags: <defaults>
</compile_context>

<pallas_src>
import jax
import jax.numpy as jnp
from jax.experimental import pallas as pl
from jax.experimental.pallas import tpu as pltpu


# ------------------------------ kernel -------------------------------------- #

def _stack_stage_kernel(a_ref, x_ref, w_ref, b_ref, o_ref, xs_ref):
    """One grid step == one GNN layer:  X' = relu(A_hat @ (X @ W_l) + b_l).

    a_ref : (N, N)    bf16  normalized adjacency (resident; fetched from HBM once)
    x_ref : (N, D)    f32   input node features (consumed only at layer 0)
    w_ref : (1, D, D) bf16  this layer's weight
    b_ref : (1, 1, D) f32   this layer's bias
    o_ref : (N, D)          output (written only at the last layer, after L2 norm)
    xs_ref: (N, D)    f32   VMEM scratch carrying node features across layers
    """
    l = pl.program_id(0)
    last = pl.num_programs(0) - 1

    @pl.when(l == 0)
    def _():
        xs_ref[...] = x_ref[...].astype(jnp.float32)

    # A @ (X @ W): small DxD matmul first, then the dominant NxN contraction.  Both dots use
    # bf16 operands with f32 accumulation on the MXU; elementwise math stays f32.
    x_bf16 = xs_ref[...].astype(jnp.bfloat16)
    xw = jnp.dot(x_bf16, w_ref[0], preferred_element_type=jnp.float32)
    h = jnp.dot(a_ref[...], xw.astype(jnp.bfloat16),
                preferred_element_type=jnp.float32)
    h = jnp.maximum(h + b_ref[0], 0.0)     # GCN bias after aggregation, then ReLU (has_act)

    @pl.when(l != last)
    def _():
        xs_ref[...] = h                    # carry state; skip the dead store on the last layer

    @pl.when(l == last)
    def _():
        # F.normalize(x, p=2, dim=-1) with eps=1e-12 (torch semantics); divide -> EUP vrcp.
        nrm = jnp.sqrt(jnp.sum(h * h, axis=-1, keepdims=True))
        inv = pl.reciprocal(jnp.maximum(nrm, 1e-12), approx=True)
        o_ref[...] = (h * inv).astype(o_ref.dtype)


# ------------------------------ wrapper ------------------------------------- #

def gnn_stack_stage(a_hat, node_feature, weights, biases):
    """GNNStackStage.forward fused into a single pallas_call.

    a_hat       : (N, N) dense symmetrically-normalized adjacency
    node_feature: (N, D) f32 node features
    weights     : (L, D, D) stacked per-layer weights (dim_in == dim_out)
    biases      : (L, 1, D) stacked per-layer biases
    """
    n, d = node_feature.shape
    num_layers = weights.shape[0]
    assert weights.shape == (num_layers, d, d)
    assert biases.shape == (num_layers, 1, d)
    assert d % 128 == 0, "keep the feature dim lane-dense (pad D to a multiple of 128)"

    a_bf16 = a_hat.astype(jnp.bfloat16)      # halves HBM/VMEM bytes for the N^2 operand
    w_bf16 = weights.astype(jnp.bfloat16)    # halves per-layer weight DMA; MXU-native dtype
    b_f32 = biases.astype(jnp.float32)

    flops = num_layers * (2 * n * n * d + 2 * n * d * d)
    bytes_accessed = (a_bf16.size * 2 + node_feature.size * 4
                      + w_bf16.size * 2 + b_f32.size * 4 + n * d * 4)

    return pl.pallas_call(
        _stack_stage_kernel,
        out_shape=jax.ShapeDtypeStruct((n, d), node_feature.dtype),
        grid_spec=pltpu.PrefetchScalarGridSpec(
            num_scalar_prefetch=0,
            grid=(num_layers,),
            in_specs=[
                pl.BlockSpec((n, n), lambda l: (0, 0)),        # A_hat: VMEM-resident
                pl.BlockSpec((n, d), lambda l: (0, 0)),        # X0:    VMEM-resident
                pl.BlockSpec((1, d, d), lambda l: (l, 0, 0)),  # W_l
                pl.BlockSpec((1, 1, d), lambda l: (l, 0, 0)),  # b_l
            ],
            out_specs=pl.BlockSpec((n, d), lambda l: (0, 0)),
            scratch_shapes=[pltpu.VMEM((n, d), jnp.float32)],
        ),
        compiler_params=pltpu.CompilerParams(
            dimension_semantics=("arbitrary",),   # layers are a carried dependency
            vmem_limit_bytes=64 * 1024 * 1024,
        ),
        cost_estimate=pl.CostEstimate(
            flops=flops, transcendentals=0, bytes_accessed=bytes_accessed),
    )(a_bf16, node_feature, w_bf16, b_f32)


# ------------------------------ reference ----------------------------------- #

def _reference(a_hat, x, weights, biases):
    for l in range(weights.shape[0]):
        x = jnp.maximum(a_hat @ x @ weights[l] + biases[l], 0.0)
    nrm = jnp.sqrt(jnp.sum(x * x, axis=-1, keepdims=True))
    return x / jnp.maximum(nrm, 1e-12)


# ------------------------------ main ---------------------------------------- #

if __name__ == "__main__":
    N, D, NUM_LAYERS = 256, 128, 3   # nodes, feature dim (lane-dense), stacked GNN layers

    key = jax.random.PRNGKey(0)
    k_adj, k_x, k_w, k_b = jax.random.split(key, 4)

    # Deterministic random graph -> symmetric adjacency + self loops -> GCN normalization.
    edges = (jax.random.uniform(k_adj, (N, N)) < 0.1).astype(jnp.float32)
    adj = jnp.maximum(edges, edges.T) + jnp.eye(N, dtype=jnp.float32)
    adj = jnp.minimum(adj, 1.0)
    d_inv_sqrt = 1.0 / jnp.sqrt(jnp.sum(adj, axis=1))
    a_hat = adj * d_inv_sqrt[:, None] * d_inv_sqrt[None, :]

    x = jax.random.normal(k_x, (N, D), dtype=jnp.float32)

    # Deterministic glorot-uniform weights and small random biases, stacked per layer.
    lim = (6.0 / (D + D)) ** 0.5
    weights = jax.random.uniform(k_w, (NUM_LAYERS, D, D), jnp.float32, -lim, lim)
    biases = 0.1 * jax.random.normal(k_b, (NUM_LAYERS, 1, D), dtype=jnp.float32)

    out = gnn_stack_stage(a_hat, x, weights, biases)
    jax.block_until_ready(out)

    ref = _reference(a_hat, x, weights, biases)
    # bf16 MXU operands (A_hat, W, X) => relaxed tolerance vs the pure-f32 reference.
    assert jnp.allclose(out, ref, rtol=5e-2, atol=5e-2), (
        "Pallas kernel mismatch vs reference: max abs diff = "
        f"{float(jnp.max(jnp.abs(out - ref)))}")

    print("KERNEL_OK")
</pallas_src>

<mosaic_0001>
module attributes {stable_mosaic.version = 11 : i64} {
  func.func @_stack_stage_kernel(%arg0: i32, %arg1: memref<256x256xbf16, #tpu.memory_space<vmem>>, %arg2: memref<256x128xf32, #tpu.memory_space<vmem>>, %arg3: memref<1x128x128xbf16, #tpu.memory_space<vmem>>, %arg4: memref<1x1x128xf32, #tpu.memory_space<vmem>>, %arg5: memref<256x128xf32, #tpu.memory_space<vmem>>, %arg6: memref<256x128xf32, #tpu.memory_space<vmem>>) attributes {dimension_semantics = [#tpu.dimension_semantics<arbitrary>], iteration_bounds = array<i64: 3>, scalar_prefetch = 0 : i64, scratch_operands = 1 : i64, tpu.core_type = #tpu.core_type<tc>, window_params = [{pipeline_mode = #tpu.pipeline_mode<synchronous>, transform_indices = @transform_0, window_bounds = array<i64: 256, 256>}, {pipeline_mode = #tpu.pipeline_mode<synchronous>, transform_indices = @transform_1, window_bounds = array<i64: 256, 128>}, {transform_indices = @transform_2, window_bounds = array<i64: 1, 128, 128>}, {transform_indices = @transform_3, window_bounds = array<i64: 1, 1, 128>}, {pipeline_mode = #tpu.pipeline_mode<synchronous>, transform_indices = @transform_4, window_bounds = array<i64: 256, 128>}]} {
    %c0_i32 = arith.constant 0 : i32
    %0 = arith.cmpi eq, %arg0, %c0_i32 : i32
    %1 = arith.extui %0 : i1 to i32
    %c0_i32_0 = arith.constant 0 : i32
    %2 = arith.cmpi ne, %1, %c0_i32_0 : i32
    scf.if %2 {
      %c0_15 = arith.constant 0 : index
      %c0_16 = arith.constant 0 : index
      %23 = vector.load %arg2[%c0_15, %c0_16] : memref<256x128xf32, #tpu.memory_space<vmem>>, vector<256x128xf32>
      %c0_17 = arith.constant 0 : index
      %c0_18 = arith.constant 0 : index
      %24 = vector.load %arg6[%c0_17, %c0_18] : memref<256x128xf32, #tpu.memory_space<vmem>>, vector<256x128xf32>
      tpu.vector_store %arg6[%c0_17, %c0_18], %23 {strides = array<i32>} : memref<256x128xf32, #tpu.memory_space<vmem>>, vector<256x128xf32>,
    } else {
    }
    %c0 = arith.constant 0 : index
    %c0_1 = arith.constant 0 : index
    %3 = vector.load %arg6[%c0, %c0_1] : memref<256x128xf32, #tpu.memory_space<vmem>>, vector<256x128xf32>
    %4 = arith.truncf %3 : vector<256x128xf32> to vector<256x128xbf16>
    %c0_2 = arith.constant 0 : index
    %c0_3 = arith.constant 0 : index
    %c0_4 = arith.constant 0 : index
    %5 = vector.load %arg3[%c0_2, %c0_3, %c0_4] : memref<1x128x128xbf16, #tpu.memory_space<vmem>>, vector<1x128x128xbf16>
    %6 = vector.shape_cast %5 : vector<1x128x128xbf16> to vector<128x128xbf16>
    %cst = arith.constant dense<0.000000e+00> : vector<256x128xf32>
    %7 = tpu.matmul %4, %6, %cst {dimension_numbers = #tpu.dot_dimension_numbers<[1], [0], [0], [1], [0, 0, 1, 1], [], []>} : vector<256x128xbf16>, vector<128x128xbf16>, vector<256x128xf32> -> vector<256x128xf32>
    %c0_5 = arith.constant 0 : index
    %c0_6 = arith.constant 0 : index
    %8 = vector.load %arg1[%c0_5, %c0_6] : memref<256x256xbf16, #tpu.memory_space<vmem>>, vector<256x256xbf16>
    %9 = arith.truncf %7 : vector<256x128xf32> to vector<256x128xbf16>
    %cst_7 = arith.constant dense<0.000000e+00> : vector<256x128xf32>
    %10 = tpu.matmul %8, %9, %cst_7 {dimension_numbers = #tpu.dot_dimension_numbers<[1], [0], [0], [1], [0, 0, 1, 1], [], []>} : vector<256x256xbf16>, vector<256x128xbf16>, vector<256x128xf32> -> vector<256x128xf32>
    %c0_8 = arith.constant 0 : index
    %c0_9 = arith.constant 0 : index
    %c0_10 = arith.constant 0 : index
    %11 = vector.load %arg4[%c0_8, %c0_9, %c0_10] : memref<1x1x128xf32, #tpu.memory_space<vmem>>, vector<1x1x128xf32>
    %12 = vector.shape_cast %11 : vector<1x1x128xf32> to vector<1x128xf32>
    %13 = vector.broadcast %12 : vector<1x128xf32> to vector<256x128xf32>
    %14 = arith.addf %10, %13 : vector<256x128xf32>
    %cst_11 = arith.constant 0.000000e+00 : f32
    %15 = vector.broadcast %cst_11 : f32 to vector<256x128xf32>
    %16 = arith.maximumf %14, %15 : vector<256x128xf32>
    %c2_i32 = arith.constant 2 : i32
    %17 = arith.cmpi ne, %arg0, %c2_i32 : i32
    %18 = arith.extui %17 : i1 to i32
    %c0_i32_12 = arith.constant 0 : i32
    %19 = arith.cmpi ne, %18, %c0_i32_12 : i32
    scf.if %19 {
      %c0_15 = arith.constant 0 : index
      %c0_16 = arith.constant 0 : index
      %23 = vector.load %arg6[%c0_15, %c0_16] : memref<256x128xf32, #tpu.memory_space<vmem>>, vector<256x128xf32>
      tpu.vector_store %arg6[%c0_15, %c0_16], %16 {strides = array<i32>} : memref<256x128xf32, #tpu.memory_space<vmem>>, vector<256x128xf32>,
    } else {
    }
    %c2_i32_13 = arith.constant 2 : i32
    %20 = arith.cmpi eq, %arg0, %c2_i32_13 : i32
    %21 = arith.extui %20 : i1 to i32
    %c0_i32_14 = arith.constant 0 : i32
    %22 = arith.cmpi ne, %21, %c0_i32_14 : i32
    scf.if %22 {
      %23 = arith.mulf %16, %16 : vector<256x128xf32>
      %cst_15 = arith.constant dense<0.000000e+00> : vector<256xf32>
      %24 = vector.multi_reduction <add>, %23, %cst_15 [1] : vector<256x128xf32> to vector<256xf32>
      %25 = vector.shape_cast %24 : vector<256xf32> to vector<256x1xf32>
      %26 = math.sqrt %25 : vector<256x1xf32>
      %cst_16 = arith.constant 9.99999996E-13 : f32
      %27 = vector.broadcast %cst_16 : f32 to vector<256x1xf32>
      %28 = arith.maximumf %26, %27 : vector<256x1xf32>
      %29 = tpu.reciprocal %28 {approx = true} : vector<256x1xf32> -> vector<256x1xf32>
      %30 = vector.broadcast %29 : vector<256x1xf32> to vector<256x128xf32>
      %31 = arith.mulf %16, %30 : vector<256x128xf32>
      %c0_17 = arith.constant 0 : index
      %c0_18 = arith.constant 0 : index
      %32 = vector.load %arg5[%c0_17, %c0_18] : memref<256x128xf32, #tpu.memory_space<vmem>>, vector<256x128xf32>
      tpu.vector_store %arg5[%c0_17, %c0_18], %31 {strides = array<i32>} : memref<256x128xf32, #tpu.memory_space<vmem>>, vector<256x128xf32>,
    } else {
    }
    return
  }
  func.func @transform_0(%arg0: i32) -> (i32, i32) {
    %c0_i32 = arith.constant 0 : i32
    %c0_i32_0 = arith.constant 0 : i32
    %c0_i32_1 = arith.constant 0 : i32
    return %c0_i32, %c0_i32_0 : i32, i32
  }
  func.func @transform_1(%arg0: i32) -> (i32, i32) {
    %c0_i32 = arith.constant 0 : i32
    %c0_i32_0 = arith.constant 0 : i32
    %c0_i32_1 = arith.constant 0 : i32
    return %c0_i32, %c0_i32_0 : i32, i32
  }
  func.func @transform_2(%arg0: i32) -> (i32, i32, i32) {
    %c0_i32 = arith.constant 0 : i32
    %c0_i32_0 = arith.constant 0 : i32
    %c0_i32_1 = arith.constant 0 : i32
    return %arg0, %c0_i32, %c0_i32_0 : i32, i32, i32
  }
  func.func @transform_3(%arg0: i32) -> (i32, i32, i32) {
    %c0_i32 = arith.constant 0 : i32
    %c0_i32_0 = arith.constant 0 : i32
    %c0_i32_1 = arith.constant 0 : i32
    return %arg0, %c0_i32, %c0_i32_0 : i32, i32, i32
  }
  func.func @transform_4(%arg0: i32) -> (i32, i32) {
    %c0_i32 = arith.constant 0 : i32
    %c0_i32_0 = arith.constant 0 : i32
    %c0_i32_1 = arith.constant 0 : i32
    return %c0_i32, %c0_i32_0 : i32, i32
  }
}

</mosaic_0001>

<llo_original>
// kernel: tpu_custom_call.1
$region0: #{tpu_custom_call.1}
  #allocation0 [shape = 'u32[]', space=smem, size = 0x4, offset = 0x4, fixed_abs, tag = 'smem constant byte address 0x4 - core index']
  #allocation1 [shape = 'u32[72,128]{1,0:T(1,128)}', space=vmem, size = 0x9000, scoped, tag = 'internal scratch']
  #allocation2 [shape = 'f32[256,128]{1,0:T(8,128)}', space=vmem, size = 0x20000, scoped, tag = 'scratch operand']
  %s0 = inlined_call_operand.hbm [shape: bf16[256,256], index: 0, kind: input, shape index: {}]
  %s1 = inlined_call_operand.hbm [shape: f32[256,128], index: 1, kind: input, shape index: {}]
  %s2 = inlined_call_operand.hbm [shape: bf16[3,128,128], index: 2, kind: input, shape index: {}]
  %s3 = inlined_call_operand.hbm [shape: f32[3,1,128], index: 3, kind: input, shape index: {}]
  %s4 = inlined_call_operand.hbm [shape: f32[256,128], index: 4, kind: output, shape index: {}]
  %s5 = sld [smem:[#allocation0]]
  $region77: #{tpu_custom_call.1} parent=0
    _
  %s7 = ssub.s32 1, %s5
  %s8 = scalar_select 0, %s7, %s5
  $region1: #{tpu_custom_call.1} parent=0
    #allocation3 [shape = 'u8[131072]{0}', space=vmem, size = 0x20000, scoped, tag = 'input window, operand 0, single buffered']
    #allocation4 [shape = 's32[2]{0}', space=sflag, size = 0x8, scoped, tag = 'scoped memory for tpu_custom_call.1']
    #allocation5 [shape = 's32[2]{0}', space=sflag, size = 0x8, scoped, tag = 'scoped memory for tpu_custom_call.1']
    #allocation6 [shape = 'u8[131072]{0}', space=vmem, size = 0x20000, scoped, tag = 'input window, operand 1, single buffered']
    #allocation7 [shape = 's32[1]{0}', space=sflag, size = 0x4, scoped, tag = 'scoped memory for tpu_custom_call.1']
    #allocation8 [shape = 'u8[65536]{0}', space=vmem, size = 0x10000, scoped, tag = 'input window, operand 2']
    #allocation9 [shape = 'u8[1024]{0}', space=vmem, size = 0x400, scoped, tag = 'input window, operand 3']
    #allocation10 [shape = 'u8[131072]{0}', space=vmem, size = 0x20000, scoped, tag = 'output window, operand 0, single buffered']
    %9 = vsyncpa [#allocation4], 0
    %10 = vsyncpa [#allocation7], 0
    %11 = vsyncpa [#allocation5], 0
    loop: start=0, step=1, limit=5
    $region2: #{tpu_custom_call.1} parent=1 // loop_pre_header
      _
    $region3: #{tpu_custom_call.1} parent=1 // loop_header
      %s13 = sphi 0, %s17
      %p14 = scmp.ge.s32.totalorder %s13, 5
      %s21 = sphi 0, %s21
      %s23 = sphi 0, %s21
      %s24 = sphi 0, %s23
      %s38 = sphi 0, %s24
      %s42 = sphi 0, %s42
      %s44 = sphi 0, %s42
      %s45 = sphi 0, %s44
      %s59 = sphi 0, %s45
      %s65 = sphi 0, %s67
      %s68 = sphi 0, %s65
      %s69 = sphi 0, %s68
      %s85 = sphi 0, %s69
      %s91 = sphi 0, %s93
      %s94 = sphi 0, %s91
      %s95 = sphi 0, %s94
      %s111 = sphi 0, %s95
      %s115 = sphi 0, %s115
      %s117 = sphi 0, %s115
      %s118 = sphi 0, %s117
      %s132 = sphi 0, %s118
    $region4: #{tpu_custom_call.1} parent=1 // loop_header_branch
      %16 = sbr.rel (%p14) target = $region8
    $region5: #{tpu_custom_call.1} parent=1 // loop_body
      %s18 = ssub.s32 %s13, 1
      %s19 = ssub.s32 %s13, 2
      %s20 = sadd.s32 %s13, 1
      %s22 = sadd.s32 %s21, 1
      %p25 = scmp.eq.s32.totalorder %s13, 2
      %p26 = scmp.ne.s32.totalorder %s21, %s23
      %p27 = scmp.eq.s32.totalorder %s13, 0
      %p28 = por %p26, %p27
      %p29 = scmp.ne.s32.totalorder %s21, %s23
      %p30 = scmp.eq.s32.totalorder %s18, 2
      %p31 = por %p29, %p30
      %p32 = scmp.ne.s32.totalorder %s23, %s24
      %p33 = scmp.eq.s32.totalorder %s18, 0
      %p34 = por %p32, %p33
      %p35 = scmp.ne.s32.totalorder %s23, %s24
      %p36 = scmp.eq.s32.totalorder %s19, 2
      %p37 = por %p35, %p36
      %p39 = scmp.ne.s32.totalorder %s24, %s38
      %p40 = scmp.eq.s32.totalorder %s19, 0
      %p41 = por %p39, %p40
      %s43 = sadd.s32 %s42, 1
      %p46 = scmp.eq.s32.totalorder %s13, 2
      %p47 = scmp.ne.s32.totalorder %s42, %s44
      %p48 = scmp.eq.s32.totalorder %s13, 0
      %p49 = por %p47, %p48
      %p50 = scmp.ne.s32.totalorder %s42, %s44
      %p51 = scmp.eq.s32.totalorder %s18, 2
      %p52 = por %p50, %p51
      %p53 = scmp.ne.s32.totalorder %s44, %s45
      %p54 = scmp.eq.s32.totalorder %s18, 0
      %p55 = por %p53, %p54
      %p56 = scmp.ne.s32.totalorder %s44, %s45
      %p57 = scmp.eq.s32.totalorder %s19, 2
      %p58 = por %p56, %p57
      %p60 = scmp.ne.s32.totalorder %s45, %s59
      %p61 = scmp.eq.s32.totalorder %s19, 0
      %p62 = por %p60, %p61
      %s63 = ssub.s32 %s13, %s20
      %p64 = scmp.eq.s32.totalorder %s63, 0
      %s66 = sadd.s32 %s65, 1
      %s67 = scalar_select %p64, %s65, %s66
      %p70 = pneg %p64
      %p71 = scmp.eq.s32.totalorder %s13, 2
      %p72 = por %p70, %p71
      %p73 = scmp.ne.s32.totalorder %s65, %s68
      %p74 = scmp.eq.s32.totalorder %s13, 0
      %p75 = por %p73, %p74
      %p76 = scmp.ne.s32.totalorder %s65, %s68
      %p77 = scmp.eq.s32.totalorder %s18, 2
      %p78 = por %p76, %p77
      %p79 = scmp.ne.s32.totalorder %s68, %s69
      %p80 = scmp.eq.s32.totalorder %s18, 0
      %p81 = por %p79, %p80
      %p82 = scmp.ne.s32.totalorder %s68, %s69
      %p83 = scmp.eq.s32.totalorder %s19, 2
      %p84 = por %p82, %p83
      %p86 = scmp.ne.s32.totalorder %s69, %s85
      %p87 = scmp.eq.s32.totalorder %s19, 0
      %p88 = por %p86, %p87
      %s89 = ssub.s32 %s13, %s20
      %p90 = scmp.eq.s32.totalorder %s89, 0
      %s92 = sadd.s32 %s91, 1
      %s93 = scalar_select %p90, %s91, %s92
      %p96 = pneg %p90
      %p97 = scmp.eq.s32.totalorder %s13, 2
      %p98 = por %p96, %p97
      %p99 = scmp.ne.s32.totalorder %s91, %s94
      %p100 = scmp.eq.s32.totalorder %s13, 0
      %p101 = por %p99, %p100
      %p102 = scmp.ne.s32.totalorder %s91, %s94
      %p103 = scmp.eq.s32.totalorder %s18, 2
      %p104 = por %p102, %p103
      %p105 = scmp.ne.s32.totalorder %s94, %s95
      %p106 = scmp.eq.s32.totalorder %s18, 0
      %p107 = por %p105, %p106
      %p108 = scmp.ne.s32.totalorder %s94, %s95
      %p109 = scmp.eq.s32.totalorder %s19, 2
      %p110 = por %p108, %p109
      %p112 = scmp.ne.s32.totalorder %s95, %s111
      %p113 = scmp.eq.s32.totalorder %s19, 0
      %p114 = por %p112, %p113
      %s116 = sadd.s32 %s115, 1
      %p119 = scmp.eq.s32.totalorder %s13, 2
      %p120 = scmp.ne.s32.totalorder %s115, %s117
      %p121 = scmp.eq.s32.totalorder %s13, 0
      %p122 = por %p120, %p121
      %p123 = scmp.ne.s32.totalorder %s115, %s117
      %p124 = scmp.eq.s32.totalorder %s18, 2
      %p125 = por %p123, %p124
      %p126 = scmp.ne.s32.totalorder %s117, %s118
      %p127 = scmp.eq.s32.totalorder %s18, 0
      %p128 = por %p126, %p127
      %p129 = scmp.ne.s32.totalorder %s117, %s118
      %p130 = scmp.eq.s32.totalorder %s19, 2
      %p131 = por %p129, %p130
      %p133 = scmp.ne.s32.totalorder %s118, %s132
      %p134 = scmp.eq.s32.totalorder %s19, 0
      %p135 = por %p133, %p134
      %p136 = scmp.le.s32.totalorder 1, %s13
      %p137 = scmp.lt.s32.totalorder %s13, 4
      %p138 = pnand %p136, %p137
      %p139 = pneg %p138
      // Predicated region
      $region9: #{tpu_custom_call.1} parent=5 // pred_check
        _
      $region10: #{tpu_custom_call.1} parent=5 // pred_check_branch
        %141 = sbr.rel (%p138) target = $region12
      $region11: #{tpu_custom_call.1} parent=5 // pred_region
        %s142 = ssub.s32 %s13, 1
        // Predicated region
        $region13: #{tpu_custom_call.1} parent=11 // pred_check
          %p143 = pneg %p34
        $region14: #{tpu_custom_call.1} parent=11 // pred_check_branch
          %145 = sbr.rel (%p143) target = $region16
        $region15: #{tpu_custom_call.1} parent=11 // pred_region
          %147 = vsyncadd [#allocation4], 0
          %s148 = sshll.u32 %s0, 4
          %s149 = int_to_ptr.hbm [resolvable:$true] %s148
          %s150 = sshll.u32 [#allocation3], 4
          %s151 = int_to_ptr.vmem [resolvable:$true] %s150
          %156 = dma.hbm_to_vmem [thread:$0]  %s149, 4096, %s151, [#allocation4], 128, 128, 8
        $region16: #{tpu_custom_call.1} parent=11 // pred_fallthru
          _
        // Predicated region
        $region17: #{tpu_custom_call.1} parent=11 // pred_check
          %p157 = pneg %p55
        $region18: #{tpu_custom_call.1} parent=11 // pred_check_branch
          %159 = sbr.rel (%p157) target = $region20
        $region19: #{tpu_custom_call.1} parent=11 // pred_region
          %161 = vsyncadd [#allocation7], 0
          %s162 = sshll.u32 %s1, 4
          %s163 = int_to_ptr.hbm [resolvable:$true] %s162
          %s164 = sshll.u32 [#allocation6], 4
          %s165 = int_to_ptr.vmem [resolvable:$true] %s164
          %170 = dma.hbm_to_vmem [thread:$0]  %s163, 4096, %s165, [#allocation7], 128, 128, 8
        $region20: #{tpu_custom_call.1} parent=11 // pred_fallthru
          _
      $region12: #{tpu_custom_call.1} parent=5 // pred_fallthru
        _
      %p171 = scmp.lt.s32.totalorder %s13, 3
      // Predicated region
      $region21: #{tpu_custom_call.1} parent=5 // pred_check
        %p172 = pneg %p171
      $region22: #{tpu_custom_call.1} parent=5 // pred_check_branch
        %174 = sbr.rel (%p172) target = $region24
      $region23: #{tpu_custom_call.1} parent=5 // pred_region
        // Predicated region
        $region25: #{tpu_custom_call.1} parent=23 // pred_check
          %p175 = pneg %p75
        $region26: #{tpu_custom_call.1} parent=23 // pred_check_branch
          %177 = sbr.rel (%p175) target = $region28
        $region27: #{tpu_custom_call.1} parent=23 // pred_region
          %s178 = sand.u32 %s13, 1
          %s179 = scalar_lea.sflag [#allocation4], %s178
          %s180 = sand.u32 %s65, 1
          %s181 = smul.addr %s180, 64
          %s182 = scalar_lea.vmem [#allocation8], %s181
          %184 = vsyncadd %s179, 0
          %s185 = smul.addr %s13, 16
          %s186 = smul.addr %s185, 4
          %s187 = scalar_lea.hbm %s2, %s186
          %s188 = sshll.u32 %s187, 4
          %s189 = int_to_ptr.hbm [resolvable:$true] %s188
          %s190 = sshll.u32 %s182, 4
          %s191 = int_to_ptr.vmem [resolvable:$true] %s190
          %196 = dma.hbm_to_vmem [thread:$0]  %s189, 1024, %s191, %s179, 64, 64, 4
        $region28: #{tpu_custom_call.1} parent=23 // pred_fallthru
          _
        // Predicated region
        $region29: #{tpu_custom_call.1} parent=23 // pred_check
          %p197 = pneg %p101
        $region30: #{tpu_custom_call.1} parent=23 // pred_check_branch
          %199 = sbr.rel (%p197) target = $region32
        $region31: #{tpu_custom_call.1} parent=23 // pred_region
          %s200 = sand.u32 %s13, 1
          %s201 = scalar_lea.sflag [#allocation4], %s200
          %s202 = sand.u32 %s91, 1
          %s203 = scalar_lea.vmem [#allocation9], %s202
          %205 = vsyncadd %s201, 0
          %s206 = scalar_lea.hbm %s3, %s13
          %s208 = sshll.u32 %s206, 4
          %s209 = int_to_ptr.hbm [resolvable:$true] %s208
          %s210 = sshll.u32 %s203, 4
          %s211 = int_to_ptr.vmem [resolvable:$true] %s210
          %213 = dma.hbm_to_vmem [thread:$0]  %s209, 16, %s211, %s201
        $region32: #{tpu_custom_call.1} parent=23 // pred_fallthru
          _
      $region24: #{tpu_custom_call.1} parent=5 // pred_fallthru
        _
      %p214 = scmp.le.s32.totalorder 1, %s13
      %p215 = scmp.lt.s32.totalorder %s13, 4
      %p216 = pnand %p214, %p215
      %p217 = pneg %p216
      // Predicated region
      $region33: #{tpu_custom_call.1} parent=5 // pred_check
        _
      $region34: #{tpu_custom_call.1} parent=5 // pred_check_branch
        %219 = sbr.rel (%p216) target = $region36
      $region35: #{tpu_custom_call.1} parent=5 // pred_region
        %s220 = ssub.s32 %s13, 1
        // Predicated region
        $region37: #{tpu_custom_call.1} parent=35 // pred_check
          %p221 = pneg %p34
        $region38: #{tpu_custom_call.1} parent=35 // pred_check_branch
          %223 = sbr.rel (%p221) target = $region40
        $region39: #{tpu_custom_call.1} parent=35 // pred_region
          %225 = dma.done [#allocation4], 4096
        $region40: #{tpu_custom_call.1} parent=35 // pred_fallthru
          _
        // Predicated region
        $region41: #{tpu_custom_call.1} parent=35 // pred_check
          %p226 = pneg %p55
        $region42: #{tpu_custom_call.1} parent=35 // pred_check_branch
          %228 = sbr.rel (%p226) target = $region44
        $region43: #{tpu_custom_call.1} parent=35 // pred_region
          %230 = dma.done [#allocation7], 4096
        $region44: #{tpu_custom_call.1} parent=35 // pred_fallthru
          _
        %s231 = sand.u32 %s18, 1
        %s232 = scalar_lea.sflag [#allocation4], %s231
        %s233 = sand.u32 %s68, 1
        %s234 = smul.addr %s233, 64
        %s235 = scalar_lea.vmem [#allocation8], %s234
        // Predicated region
        $region45: #{tpu_custom_call.1} parent=35 // pred_check
          %p236 = pneg %p81
        $region46: #{tpu_custom_call.1} parent=35 // pred_check_branch
          %238 = sbr.rel (%p236) target = $region48
        $region47: #{tpu_custom_call.1} parent=35 // pred_region
          %240 = dma.done %s232, 1024
        $region48: #{tpu_custom_call.1} parent=35 // pred_fallthru
          _
        %s241 = sand.u32 %s18, 1
        %s242 = scalar_lea.sflag [#allocation4], %s241
        %s243 = sand.u32 %s94, 1
        %s244 = scalar_lea.vmem [#allocation9], %s243
        // Predicated region
        $region49: #{tpu_custom_call.1} parent=35 // pred_check
          %p245 = pneg %p107
        $region50: #{tpu_custom_call.1} parent=35 // pred_check_branch
          %247 = sbr.rel (%p245) target = $region52
        $region51: #{tpu_custom_call.1} parent=35 // pred_region
          %249 = dma.done %s242, 16
        $region52: #{tpu_custom_call.1} parent=35 // pred_fallthru
          _
        %p250 = pneg %p34
        %p251 = pneg %p31
        %p252 = pneg %p55
        %p253 = pneg %p52
        %s254 = sand.u32 %s18, 1
        %s255 = scalar_lea.sflag [#allocation4], %s254
        %s256 = sand.u32 %s68, 1
        %s257 = smul.addr %s256, 64
        %s258 = scalar_lea.vmem [#allocation8], %s257
        %p259 = pneg %p81
        %p260 = pneg %p78
        %s261 = sand.u32 %s18, 1
        %s262 = scalar_lea.sflag [#allocation4], %s261
        %s263 = sand.u32 %s94, 1
        %s264 = scalar_lea.vmem [#allocation9], %s263
        %p265 = pneg %p107
        %p266 = pneg %p104
        %p267 = pneg %p128
        %p268 = pneg %p125
        %p269 = scmp.eq.s32.totalorder %s18, 0
        // Predicated region
        $region53: #{tpu_custom_call.1} parent=35 // pred_check
          %p270 = pneg %p269
        $region54: #{tpu_custom_call.1} parent=35 // pred_check_branch
          %272 = sbr.rel (%p270) target = $region56
        $region55: #{tpu_custom_call.1} parent=35 // pred_region
          %v273 = vld [vmem:[#allocation6] sm:$0xff]
          %v274 = vld [vmem:[#allocation6 + $0x8] sm:$0xff]
          %v275 = vld [vmem:[#allocation6 + $0x10] sm:$0xff]
          %v276 = vld [vmem:[#allocation6 + $0x18] sm:$0xff]
          %v277 = vld [vmem:[#allocation6 + $0x20] sm:$0xff]
          %v278 = vld [vmem:[#allocation6 + $0x28] sm:$0xff]
          %v279 = vld [vmem:[#allocation6 + $0x30] sm:$0xff]
          %v280 = vld [vmem:[#allocation6 + $0x38] sm:$0xff]
          %v281 = vld [vmem:[#allocation6 + $0x40] sm:$0xff]
          %v282 = vld [vmem:[#allocation6 + $0x48] sm:$0xff]
          %v283 = vld [vmem:[#allocation6 + $0x50] sm:$0xff]
          %v284 = vld [vmem:[#allocation6 + $0x58] sm:$0xff]
          %v285 = vld [vmem:[#allocation6 + $0x60] sm:$0xff]
          %v286 = vld [vmem:[#allocation6 + $0x68] sm:$0xff]
          %v287 = vld [vmem:[#allocation6 + $0x70] sm:$0xff]
          %v288 = vld [vmem:[#allocation6 + $0x78] sm:$0xff]
          %v289 = vld [vmem:[#allocation6 + $0x80] sm:$0xff]
          %v290 = vld [vmem:[#allocation6 + $0x88] sm:$0xff]
          %v291 = vld [vmem:[#allocation6 + $0x90] sm:$0xff]
          %v292 = vld [vmem:[#allocation6 + $0x98] sm:$0xff]
          %v293 = vld [vmem:[#allocation6 + $0xa0] sm:$0xff]
          %v294 = vld [vmem:[#allocation6 + $0xa8] sm:$0xff]
          %v295 = vld [vmem:[#allocation6 + $0xb0] sm:$0xff]
          %v296 = vld [vmem:[#allocation6 + $0xb8] sm:$0xff]
          %v297 = vld [vmem:[#allocation6 + $0xc0] sm:$0xff]
          %v298 = vld [vmem:[#allocation6 + $0xc8] sm:$0xff]
          %v299 = vld [vmem:[#allocation6 + $0xd0] sm:$0xff]
          %v300 = vld [vmem:[#allocation6 + $0xd8] sm:$0xff]
          %v301 = vld [vmem:[#allocation6 + $0xe0] sm:$0xff]
          %v302 = vld [vmem:[#allocation6 + $0xe8] sm:$0xff]
          %v303 = vld [vmem:[#allocation6 + $0xf0] sm:$0xff]
          %v304 = vld [vmem:[#allocation6 + $0xf8] sm:$0xff]
          %305 = vst [vmem:[#allocation2] sm:$0xff] %v273
          %306 = vst [vmem:[#allocation2 + $0x8] sm:$0xff] %v274
          %307 = vst [vmem:[#allocation2 + $0x10] sm:$0xff] %v275
          %308 = vst [vmem:[#allocation2 + $0x18] sm:$0xff] %v276
          %309 = vst [vmem:[#allocation2 + $0x20] sm:$0xff] %v277
          %310 = vst [vmem:[#allocation2 + $0x28] sm:$0xff] %v278
          %311 = vst [vmem:[#allocation2 + $0x30] sm:$0xff] %v279
          %312 = vst [vmem:[#allocation2 + $0x38] sm:$0xff] %v280
          %313 = vst [vmem:[#allocation2 + $0x40] sm:$0xff] %v281
          %314 = vst [vmem:[#allocation2 + $0x48] sm:$0xff] %v282
          %315 = vst [vmem:[#allocation2 + $0x50] sm:$0xff] %v283
          %316 = vst [vmem:[#allocation2 + $0x58] sm:$0xff] %v284
          %317 = vst [vmem:[#allocation2 + $0x60] sm:$0xff] %v285
          %318 = vst [vmem:[#allocation2 + $0x68] sm:$0xff] %v286
          %319 = vst [vmem:[#allocation2 + $0x70] sm:$0xff] %v287
          %320 = vst [vmem:[#allocation2 + $0x78] sm:$0xff] %v288
          %321 = vst [vmem:[#allocation2 + $0x80] sm:$0xff] %v289
          %322 = vst [vmem:[#allocation2 + $0x88] sm:$0xff] %v290
          %323 = vst [vmem:[#allocation2 + $0x90] sm:$0xff] %v291
          %324 = vst [vmem:[#allocation2 + $0x98] sm:$0xff] %v292
          %325 = vst [vmem:[#allocation2 + $0xa0] sm:$0xff] %v293
          %326 = vst [vmem:[#allocation2 + $0xa8] sm:$0xff] %v294
          %327 = vst [vmem:[#allocation2 + $0xb0] sm:$0xff] %v295
          %328 = vst [vmem:[#allocation2 + $0xb8] sm:$0xff] %v296
          %329 = vst [vmem:[#allocation2 + $0xc0] sm:$0xff] %v297
          %330 = vst [vmem:[#allocation2 + $0xc8] sm:$0xff] %v298
          %331 = vst [vmem:[#allocation2 + $0xd0] sm:$0xff] %v299
          %332 = vst [vmem:[#allocation2 + $0xd8] sm:$0xff] %v300
          %333 = vst [vmem:[#allocation2 + $0xe0] sm:$0xff] %v301
          %334 = vst [vmem:[#allocation2 + $0xe8] sm:$0xff] %v302
          %335 = vst [vmem:[#allocation2 + $0xf0] sm:$0xff] %v303
          %336 = vst [vmem:[#allocation2 + $0xf8] sm:$0xff] %v304
        $region56: #{tpu_custom_call.1} parent=35 // pred_fallthru
          _
        %v337 = vld [vmem:[#allocation2] sm:$0xff]
        %v338 = vld [vmem:[#allocation2 + $0x8] sm:$0xff]
        %v339 = vld [vmem:[#allocation2 + $0x10] sm:$0xff]
        %v340 = vld [vmem:[#allocation2 + $0x18] sm:$0xff]
        %v341 = vld [vmem:[#allocation2 + $0x20] sm:$0xff]
        %v342 = vld [vmem:[#allocation2 + $0x28] sm:$0xff]
        %v343 = vld [vmem:[#allocation2 + $0x30] sm:$0xff]
        %v344 = vld [vmem:[#allocation2 + $0x38] sm:$0xff]
        %v345 = vld [vmem:[#allocation2 + $0x40] sm:$0xff]
        %v346 = vld [vmem:[#allocation2 + $0x48] sm:$0xff]
        %v347 = vld [vmem:[#allocation2 + $0x50] sm:$0xff]
        %v348 = vld [vmem:[#allocation2 + $0x58] sm:$0xff]
        %v349 = vld [vmem:[#allocation2 + $0x60] sm:$0xff]
        %v350 = vld [vmem:[#allocation2 + $0x68] sm:$0xff]
        %v351 = vld [vmem:[#allocation2 + $0x70] sm:$0xff]
        %v352 = vld [vmem:[#allocation2 + $0x78] sm:$0xff]
        %v353 = vld [vmem:[#allocation2 + $0x80] sm:$0xff]
        %v354 = vld [vmem:[#allocation2 + $0x88] sm:$0xff]
        %v355 = vld [vmem:[#allocation2 + $0x90] sm:$0xff]
        %v356 = vld [vmem:[#allocation2 + $0x98] sm:$0xff]
        %v357 = vld [vmem:[#allocation2 + $0xa0] sm:$0xff]
        %v358 = vld [vmem:[#allocation2 + $0xa8] sm:$0xff]
        %v359 = vld [vmem:[#allocation2 + $0xb0] sm:$0xff]
        %v360 = vld [vmem:[#allocation2 + $0xb8] sm:$0xff]
        %v361 = vld [vmem:[#allocation2 + $0xc0] sm:$0xff]
        %v362 = vld [vmem:[#allocation2 + $0xc8] sm:$0xff]
        %v363 = vld [vmem:[#allocation2 + $0xd0] sm:$0xff]
        %v364 = vld [vmem:[#allocation2 + $0xd8] sm:$0xff]
        %v365 = vld [vmem:[#allocation2 + $0xe0] sm:$0xff]
        %v366 = vld [vmem:[#allocation2 + $0xe8] sm:$0xff]
        %v367 = vld [vmem:[#allocation2 + $0xf0] sm:$0xff]
        %v368 = vld [vmem:[#allocation2 + $0xf8] sm:$0xff]
        %v369 = vpack.c.bf16 %v338, %v337
        %v370 = vpack.c.bf16 %v340, %v339
        %v371 = vpack.c.bf16 %v342, %v341
        %v372 = vpack.c.bf16 %v344, %v343
        %v373 = vpack.c.bf16 %v346, %v345
        %v374 = vpack.c.bf16 %v348, %v347
        %v375 = vpack.c.bf16 %v350, %v349
        %v376 = vpack.c.bf16 %v352, %v351
        %v377 = vpack.c.bf16 %v354, %v353
        %v378 = vpack.c.bf16 %v356, %v355
        %v379 = vpack.c.bf16 %v358, %v357
        %v380 = vpack.c.bf16 %v360, %v359
        %v381 = vpack.c.bf16 %v362, %v361
        %v382 = vpack.c.bf16 %v364, %v363
        %v383 = vpack.c.bf16 %v366, %v365
        %v384 = vpack.c.bf16 %v368, %v367
        %v385 = vld [vmem:[%s235] sm:$0xf]
        %v386 = vld [vmem:[%s235 + $0x4] sm:$0xf]
        %v387 = vld [vmem:[%s235 + $0x8] sm:$0xf]
        %v388 = vld [vmem:[%s235 + $0xc] sm:$0xf]
        %v389 = vld [vmem:[%s235 + $0x10] sm:$0xf]
        %v390 = vld [vmem:[%s235 + $0x14] sm:$0xf]
        %v391 = vld [vmem:[%s235 + $0x18] sm:$0xf]
        %v392 = vld [vmem:[%s235 + $0x1c] sm:$0xf]
        %v393 = vld [vmem:[%s235 + $0x20] sm:$0xf]
        %v394 = vld [vmem:[%s235 + $0x24] sm:$0xf]
        %v395 = vld [vmem:[%s235 + $0x28] sm:$0xf]
        %v396 = vld [vmem:[%s235 + $0x2c] sm:$0xf]
        %v397 = vld [vmem:[%s235 + $0x30] sm:$0xf]
        %v398 = vld [vmem:[%s235 + $0x34] sm:$0xf]
        %v399 = vld [vmem:[%s235 + $0x38] sm:$0xf]
        %v400 = vld [vmem:[%s235 + $0x3c] sm:$0xf]
        %v417 = vunpack.c.l.b16 %v385
        %v418 = vunpack.c.l.b16 %v386
        %v419 = vunpack.c.l.b16 %v387
        %v420 = vunpack.c.l.b16 %v388
        %v421 = vunpack.c.l.b16 %v389
        %v422 = vunpack.c.l.b16 %v390
        %v423 = vunpack.c.l.b16 %v391
        %v424 = vunpack.c.l.b16 %v392
        %v425 = vunpack.c.l.b16 %v393
        %v426 = vunpack.c.l.b16 %v394
        %v427 = vunpack.c.l.b16 %v395
        %v428 = vunpack.c.l.b16 %v396
        %v429 = vunpack.c.l.b16 %v397
        %v430 = vunpack.c.l.b16 %v398
        %v431 = vunpack.c.l.b16 %v399
        %v432 = vunpack.c.l.b16 %v400
        %v433 = vpack.c.b16 %v418, %v417
        %v434 = vpack.c.b16 %v420, %v419
        %v435 = vpack.c.b16 %v422, %v421
        %v436 = vpack.c.b16 %v424, %v423
        %v437 = vpack.c.b16 %v426, %v425
        %v438 = vpack.c.b16 %v428, %v427
        %v439 = vpack.c.b16 %v430, %v429
        %v440 = vpack.c.b16 %v432, %v431
        %449 = vmatpush.bf16.msra.mxu0 %v440
        %450 = vmatpush.bf16.msra.mxu0 %v439
        %451 = vmatpush.bf16.msra.mxu0 %v438
        %452 = vmatpush.bf16.msra.mxu0 %v437
        %453 = vmatpush.bf16.msra.mxu0 %v436
        %454 = vmatpush.bf16.msra.mxu0 %v435
        %455 = vmatpush.bf16.msra.mxu0 %v434
        %456 = vmatpush.bf16.msra.mxu0 %v433
        %457 = vmatmul.bf16.gmra.mxu0 %v369
        %v458 = vpop.f32.mrf.mxu0
        %v459 = vadd.f32 0.0, %v458
        %v460 = vpop.f32.mrf.mxu0
        %v461 = vadd.f32 0.0, %v460
        %462 = vmatmul.bf16.gmra.mxu0 %v370
        %v463 = vpop.f32.mrf.mxu0
        %v464 = vadd.f32 0.0, %v463
        %v465 = vpop.f32.mrf.mxu0
        %v466 = vadd.f32 0.0, %v465
        %467 = vmatmul.bf16.gmra.mxu0 %v371
        %v468 = vpop.f32.mrf.mxu0
        %v469 = vadd.f32 0.0, %v468
        %v470 = vpop.f32.mrf.mxu0
        %v471 = vadd.f32 0.0, %v470
        %472 = vmatmul.bf16.gmra.mxu0 %v372
        %v473 = vpop.f32.mrf.mxu0
        %v474 = vadd.f32 0.0, %v473
        %v475 = vpop.f32.mrf.mxu0
        %v476 = vadd.f32 0.0, %v475
        %477 = vmatmul.bf16.gmra.mxu0 %v373
        %v478 = vpop.f32.mrf.mxu0
        %v479 = vadd.f32 0.0, %v478
        %v480 = vpop.f32.mrf.mxu0
        %v481 = vadd.f32 0.0, %v480
        %482 = vmatmul.bf16.gmra.mxu0 %v374
        %v483 = vpop.f32.mrf.mxu0
        %v484 = vadd.f32 0.0, %v483
        %v485 = vpop.f32.mrf.mxu0
        %v486 = vadd.f32 0.0, %v485
        %487 = vmatmul.bf16.gmra.mxu0 %v375
        %v488 = vpop.f32.mrf.mxu0
        %v489 = vadd.f32 0.0, %v488
        %v490 = vpop.f32.mrf.mxu0
        %v491 = vadd.f32 0.0, %v490
        %492 = vmatmul.bf16.gmra.mxu0 %v376
        %v493 = vpop.f32.mrf.mxu0
        %v494 = vadd.f32 0.0, %v493
        %v495 = vpop.f32.mrf.mxu0
        %v496 = vadd.f32 0.0, %v495
        %497 = vmatmul.bf16.gmra.mxu0 %v377
        %v498 = vpop.f32.mrf.mxu0
        %v499 = vadd.f32 0.0, %v498
        %v500 = vpop.f32.mrf.mxu0
        %v501 = vadd.f32 0.0, %v500
        %502 = vmatmul.bf16.gmra.mxu0 %v378
        %v503 = vpop.f32.mrf.mxu0
        %v504 = vadd.f32 0.0, %v503
        %v505 = vpop.f32.mrf.mxu0
        %v506 = vadd.f32 0.0, %v505
        %507 = vmatmul.bf16.gmra.mxu0 %v379
        %v508 = vpop.f32.mrf.mxu0
        %v509 = vadd.f32 0.0, %v508
        %v510 = vpop.f32.mrf.mxu0
        %v511 = vadd.f32 0.0, %v510
        %512 = vmatmul.bf16.gmra.mxu0 %v380
        %v513 = vpop.f32.mrf.mxu0
        %v514 = vadd.f32 0.0, %v513
        %v515 = vpop.f32.mrf.mxu0
        %v516 = vadd.f32 0.0, %v515
        %517 = vmatmul.bf16.gmra.mxu0 %v381
        %v518 = vpop.f32.mrf.mxu0
        %v519 = vadd.f32 0.0, %v518
        %v520 = vpop.f32.mrf.mxu0
        %v521 = vadd.f32 0.0, %v520
        %522 = vmatmul.bf16.gmra.mxu0 %v382
        %v523 = vpop.f32.mrf.mxu0
        %v524 = vadd.f32 0.0, %v523
        %v525 = vpop.f32.mrf.mxu0
        %v526 = vadd.f32 0.0, %v525
        %527 = vmatmul.bf16.gmra.mxu0 %v383
        %v528 = vpop.f32.mrf.mxu0
        %v529 = vadd.f32 0.0, %v528
        %v530 = vpop.f32.mrf.mxu0
        %v531 = vadd.f32 0.0, %v530
        %532 = vmatmul.bf16.gmra.mxu0 %v384
        %v533 = vpop.f32.mrf.mxu0
        %v534 = vadd.f32 0.0, %v533
        %v535 = vpop.f32.mrf.mxu0
        %v536 = vadd.f32 0.0, %v535
        %537 = vdwg.mxu0
        %v538 = vld [vmem:[#allocation3] sm:$0xff]
        %v539 = vld [vmem:[#allocation3 + $0x8] sm:$0xff]
        %v540 = vld [vmem:[#allocation3 + $0x10] sm:$0xff]
        %v541 = vld [vmem:[#allocation3 + $0x18] sm:$0xff]
        %v542 = vld [vmem:[#allocation3 + $0x20] sm:$0xff]
        %v543 = vld [vmem:[#allocation3 + $0x28] sm:$0xff]
        %v544 = vld [vmem:[#allocation3 + $0x30] sm:$0xff]
        %v545 = vld [vmem:[#allocation3 + $0x38] sm:$0xff]
        %v546 = vld [vmem:[#allocation3 + $0x40] sm:$0xff]
        %v547 = vld [vmem:[#allocation3 + $0x48] sm:$0xff]
        %v548 = vld [vmem:[#allocation3 + $0x50] sm:$0xff]
        %v549 = vld [vmem:[#allocation3 + $0x58] sm:$0xff]
        %v550 = vld [vmem:[#allocation3 + $0x60] sm:$0xff]
        %v551 = vld [vmem:[#allocation3 + $0x68] sm:$0xff]
        %v552 = vld [vmem:[#allocation3 + $0x70] sm:$0xff]
        %v553 = vld [vmem:[#allocation3 + $0x78] sm:$0xff]
        %v554 = vld [vmem:[#allocation3 + $0x80] sm:$0xff]
        %v555 = vld [vmem:[#allocation3 + $0x88] sm:$0xff]
        %v556 = vld [vmem:[#allocation3 + $0x90] sm:$0xff]
        %v557 = vld [vmem:[#allocation3 + $0x98] sm:$0xff]
        %v558 = vld [vmem:[#allocation3 + $0xa0] sm:$0xff]
        %v559 = vld [vmem:[#allocation3 + $0xa8] sm:$0xff]
        %v560 = vld [vmem:[#allocation3 + $0xb0] sm:$0xff]
        %v561 = vld [vmem:[#allocation3 + $0xb8] sm:$0xff]
        %v562 = vld [vmem:[#allocation3 + $0xc0] sm:$0xff]
        %v563 = vld [vmem:[#allocation3 + $0xc8] sm:$0xff]
        %v564 = vld [vmem:[#allocation3 + $0xd0] sm:$0xff]
        %v565 = vld [vmem:[#allocation3 + $0xd8] sm:$0xff]
        %v566 = vld [vmem:[#allocation3 + $0xe0] sm:$0xff]
        %v567 = vld [vmem:[#allocation3 + $0xe8] sm:$0xff]
        %v568 = vld [vmem:[#allocation3 + $0xf0] sm:$0xff]
        %v569 = vld [vmem:[#allocation3 + $0xf8] sm:$0xff]
        %v570 = vpack.c.bf16 %v461, %v459
        %v571 = vpack.c.bf16 %v466, %v464
        %v572 = vpack.c.bf16 %v471, %v469
        %v573 = vpack.c.bf16 %v476, %v474
        %v574 = vpack.c.bf16 %v481, %v479
        %v575 = vpack.c.bf16 %v486, %v484
        %v576 = vpack.c.bf16 %v491, %v489
        %v577 = vpack.c.bf16 %v496, %v494
        %v578 = vpack.c.bf16 %v501, %v499
        %v579 = vpack.c.bf16 %v506, %v504
        %v580 = vpack.c.bf16 %v511, %v509
        %v581 = vpack.c.bf16 %v516, %v514
        %v582 = vpack.c.bf16 %v521, %v519
        %v583 = vpack.c.bf16 %v526, %v524
        %v584 = vpack.c.bf16 %v531, %v529
        %v585 = vpack.c.bf16 %v536, %v534
        %v586 = vld [vmem:[%s244] sm:$0x1]
        %v588 = vperm.slane %v586, 0
        %v622 = vunpack.c.l.b16 %v538
        %v623 = vunpack.c.h.b16 %v538
        %v624 = vunpack.c.l.b16 %v539
        %v625 = vunpack.c.h.b16 %v539
        %v626 = vunpack.c.l.b16 %v540
        %v627 = vunpack.c.h.b16 %v540
        %v628 = vunpack.c.l.b16 %v541
        %v629 = vunpack.c.h.b16 %v541
        %v630 = vunpack.c.l.b16 %v542
        %v631 = vunpack.c.h.b16 %v542
        %v632 = vunpack.c.l.b16 %v543
        %v633 = vunpack.c.h.b16 %v543
        %v634 = vunpack.c.l.b16 %v544
        %v635 = vunpack.c.h.b16 %v544
        %v636 = vunpack.c.l.b16 %v545
        %v637 = vunpack.c.h.b16 %v545
        %v638 = vunpack.c.l.b16 %v546
        %v639 = vunpack.c.h.b16 %v546
        %v640 = vunpack.c.l.b16 %v547
        %v641 = vunpack.c.h.b16 %v547
        %v642 = vunpack.c.l.b16 %v548
        %v643 = vunpack.c.h.b16 %v548
        %v644 = vunpack.c.l.b16 %v549
        %v645 = vunpack.c.h.b16 %v549
        %v646 = vunpack.c.l.b16 %v550
        %v647 = vunpack.c.h.b16 %v550
        %v648 = vunpack.c.l.b16 %v551
        %v649 = vunpack.c.h.b16 %v551
        %v650 = vunpack.c.l.b16 %v552
        %v651 = vunpack.c.h.b16 %v552
        %v652 = vunpack.c.l.b16 %v553
        %v653 = vunpack.c.h.b16 %v553
        %v654 = vunpack.c.l.b16 %v554
        %v655 = vunpack.c.h.b16 %v554
        %v656 = vunpack.c.l.b16 %v555
        %v657 = vunpack.c.h.b16 %v555
        %v658 = vunpack.c.l.b16 %v556
        %v659 = vunpack.c.h.b16 %v556
        %v660 = vunpack.c.l.b16 %v557
        %v661 = vunpack.c.h.b16 %v557
        %v662 = vunpack.c.l.b16 %v558
        %v663 = vunpack.c.h.b16 %v558
        %v664 = vunpack.c.l.b16 %v559
        %v665 = vunpack.c.h.b16 %v559
        %v666 = vunpack.c.l.b16 %v560
        %v667 = vunpack.c.h.b16 %v560
        %v668 = vunpack.c.l.b16 %v561
        %v669 = vunpack.c.h.b16 %v561
        %v670 = vunpack.c.l.b16 %v562
        %v671 = vunpack.c.h.b16 %v562
        %v672 = vunpack.c.l.b16 %v563
        %v673 = vunpack.c.h.b16 %v563
        %v674 = vunpack.c.l.b16 %v564
        %v675 = vunpack.c.h.b16 %v564
        %v676 = vunpack.c.l.b16 %v565
        %v677 = vunpack.c.h.b16 %v565
        %v678 = vunpack.c.l.b16 %v566
        %v679 = vunpack.c.h.b16 %v566
        %v680 = vunpack.c.l.b16 %v567
        %v681 = vunpack.c.h.b16 %v567
        %v682 = vunpack.c.l.b16 %v568
        %v683 = vunpack.c.h.b16 %v568
        %v684 = vunpack.c.l.b16 %v569
        %v685 = vunpack.c.h.b16 %v569
        %v686 = vpack.c.b16 %v624, %v622
        %v687 = vpack.c.b16 %v625, %v623
        %v688 = vpack.c.b16 %v628, %v626
        %v689 = vpack.c.b16 %v629, %v627
        %v690 = vpack.c.b16 %v632, %v630
        %v691 = vpack.c.b16 %v633, %v631
        %v692 = vpack.c.b16 %v636, %v634
        %v693 = vpack.c.b16 %v637, %v635
        %v694 = vpack.c.b16 %v640, %v638
        %v695 = vpack.c.b16 %v641, %v639
        %v696 = vpack.c.b16 %v644, %v642
        %v697 = vpack.c.b16 %v645, %v643
        %v698 = vpack.c.b16 %v648, %v646
        %v699 = vpack.c.b16 %v649, %v647
        %v700 = vpack.c.b16 %v652, %v650
        %v701 = vpack.c.b16 %v653, %v651
        %v702 = vpack.c.b16 %v656, %v654
        %v703 = vpack.c.b16 %v657, %v655
        %v704 = vpack.c.b16 %v660, %v658
        %v705 = vpack.c.b16 %v661, %v659
        %v706 = vpack.c.b16 %v664, %v662
        %v707 = vpack.c.b16 %v665, %v663
        %v708 = vpack.c.b16 %v668, %v666
        %v709 = vpack.c.b16 %v669, %v667
        %v710 = vpack.c.b16 %v672, %v670
        %v711 = vpack.c.b16 %v673, %v671
        %v712 = vpack.c.b16 %v676, %v674
        %v713 = vpack.c.b16 %v677, %v675
        %v714 = vpack.c.b16 %v680, %v678
        %v715 = vpack.c.b16 %v681, %v679
        %v716 = vpack.c.b16 %v684, %v682
        %v717 = vpack.c.b16 %v685, %v683
        %750 = vmatpush.bf16.msra.mxu0 %v577
        %751 = vmatpush.bf16.msra.mxu0 %v576
        %752 = vmatpush.bf16.msra.mxu0 %v575
        %753 = vmatpush.bf16.msra.mxu0 %v574
        %754 = vmatpush.bf16.msra.mxu0 %v573
        %755 = vmatpush.bf16.msra.mxu0 %v572
        %756 = vmatpush.bf16.msra.mxu0 %v571
        %757 = vmatpush.bf16.msra.mxu0 %v570
        %758 = vmatmul.bf16.gmra.mxu0 %v686
        %v759 = vpop.f32.mrf.mxu0
        %v760 = vadd.f32 %v588, %v759
        %v761 = vpop.f32.mrf.mxu0
        %v762 = vadd.f32 %v588, %v761
        %763 = vmatmul.bf16.gmra.mxu0 %v688
        %v764 = vpop.f32.mrf.mxu0
        %v765 = vadd.f32 %v588, %v764
        %v766 = vpop.f32.mrf.mxu0
        %v767 = vadd.f32 %v588, %v766
        %768 = vmatmul.bf16.gmra.mxu0 %v690
        %v769 = vpop.f32.mrf.mxu0
        %v770 = vadd.f32 %v588, %v769
        %v771 = vpop.f32.mrf.mxu0
        %v772 = vadd.f32 %v588, %v771
        %773 = vmatmul.bf16.gmra.mxu0 %v692
        %v774 = vpop.f32.mrf.mxu0
        %v775 = vadd.f32 %v588, %v774
        %v776 = vpop.f32.mrf.mxu0
        %v777 = vadd.f32 %v588, %v776
        %778 = vmatmul.bf16.gmra.mxu0 %v694
        %v779 = vpop.f32.mrf.mxu0
        %v780 = vadd.f32 %v588, %v779
        %v781 = vpop.f32.mrf.mxu0
        %v782 = vadd.f32 %v588, %v781
        %783 = vmatmul.bf16.gmra.mxu0 %v696
        %v784 = vpop.f32.mrf.mxu0
        %v785 = vadd.f32 %v588, %v784
        %v786 = vpop.f32.mrf.mxu0
        %v787 = vadd.f32 %v588, %v786
        %788 = vmatmul.bf16.gmra.mxu0 %v698
        %v789 = vpop.f32.mrf.mxu0
        %v790 = vadd.f32 %v588, %v789
        %v791 = vpop.f32.mrf.mxu0
        %v792 = vadd.f32 %v588, %v791
        %793 = vmatmul.bf16.gmra.mxu0 %v700
        %v794 = vpop.f32.mrf.mxu0
        %v795 = vadd.f32 %v588, %v794
        %v796 = vpop.f32.mrf.mxu0
        %v797 = vadd.f32 %v588, %v796
        %798 = vmatmul.bf16.gmra.mxu0 %v702
        %v799 = vpop.f32.mrf.mxu0
        %v800 = vadd.f32 %v588, %v799
        %v801 = vpop.f32.mrf.mxu0
        %v802 = vadd.f32 %v588, %v801
        %803 = vmatmul.bf16.gmra.mxu0 %v704
        %v804 = vpop.f32.mrf.mxu0
        %v805 = vadd.f32 %v588, %v804
        %v806 = vpop.f32.mrf.mxu0
        %v807 = vadd.f32 %v588, %v806
        %808 = vmatmul.bf16.gmra.mxu0 %v706
        %v809 = vpop.f32.mrf.mxu0
        %v810 = vadd.f32 %v588, %v809
        %v811 = vpop.f32.mrf.mxu0
        %v812 = vadd.f32 %v588, %v811
        %813 = vmatmul.bf16.gmra.mxu0 %v708
        %v814 = vpop.f32.mrf.mxu0
        %v815 = vadd.f32 %v588, %v814
        %v816 = vpop.f32.mrf.mxu0
        %v817 = vadd.f32 %v588, %v816
        %818 = vmatmul.bf16.gmra.mxu0 %v710
        %v819 = vpop.f32.mrf.mxu0
        %v820 = vadd.f32 %v588, %v819
        %v821 = vpop.f32.mrf.mxu0
        %v822 = vadd.f32 %v588, %v821
        %823 = vmatmul.bf16.gmra.mxu0 %v712
        %v824 = vpop.f32.mrf.mxu0
        %v825 = vadd.f32 %v588, %v824
        %v826 = vpop.f32.mrf.mxu0
        %v827 = vadd.f32 %v588, %v826
        %828 = vmatmul.bf16.gmra.mxu0 %v714
        %v829 = vpop.f32.mrf.mxu0
        %v830 = vadd.f32 %v588, %v829
        %v831 = vpop.f32.mrf.mxu0
        %v832 = vadd.f32 %v588, %v831
        %833 = vmatmul.bf16.gmra.mxu0 %v716
        %v834 = vpop.f32.mrf.mxu0
        %v835 = vadd.f32 %v588, %v834
        %v836 = vpop.f32.mrf.mxu0
        %v837 = vadd.f32 %v588, %v836
        %838 = vdwg.mxu0
        %839 = vmatpush.bf16.msra.mxu0 %v585
        %840 = vmatpush.bf16.msra.mxu0 %v584
        %841 = vmatpush.bf16.msra.mxu0 %v583
        %842 = vmatpush.bf16.msra.mxu0 %v582
        %843 = vmatpush.bf16.msra.mxu0 %v581
        %844 = vmatpush.bf16.msra.mxu0 %v580
        %845 = vmatpush.bf16.msra.mxu0 %v579
        %846 = vmatpush.bf16.msra.mxu0 %v578
        %847 = vmatmul.bf16.gmra.mxu0 %v687
        %v848 = vpop.f32.mrf.mxu0
        %v849 = vadd.f32 %v760, %v848
        %v850 = vpop.f32.mrf.mxu0
        %v851 = vadd.f32 %v762, %v850
        %852 = vmatmul.bf16.gmra.mxu0 %v689
        %v853 = vpop.f32.mrf.mxu0
        %v854 = vadd.f32 %v765, %v853
        %v855 = vpop.f32.mrf.mxu0
        %v856 = vadd.f32 %v767, %v855
        %857 = vmatmul.bf16.gmra.mxu0 %v691
        %v858 = vpop.f32.mrf.mxu0
        %v859 = vadd.f32 %v770, %v858
        %v860 = vpop.f32.mrf.mxu0
        %v861 = vadd.f32 %v772, %v860
        %862 = vmatmul.bf16.gmra.mxu0 %v693
        %v863 = vpop.f32.mrf.mxu0
        %v864 = vadd.f32 %v775, %v863
        %v865 = vpop.f32.mrf.mxu0
        %v866 = vadd.f32 %v777, %v865
        %867 = vmatmul.bf16.gmra.mxu0 %v695
        %v868 = vpop.f32.mrf.mxu0
        %v869 = vadd.f32 %v780, %v868
        %v870 = vpop.f32.mrf.mxu0
        %v871 = vadd.f32 %v782, %v870
        %872 = vmatmul.bf16.gmra.mxu0 %v697
        %v873 = vpop.f32.mrf.mxu0
        %v874 = vadd.f32 %v785, %v873
        %v875 = vpop.f32.mrf.mxu0
        %v876 = vadd.f32 %v787, %v875
        %877 = vmatmul.bf16.gmra.mxu0 %v699
        %v878 = vpop.f32.mrf.mxu0
        %v879 = vadd.f32 %v790, %v878
        %v880 = vpop.f32.mrf.mxu0
        %v881 = vadd.f32 %v792, %v880
        %882 = vmatmul.bf16.gmra.mxu0 %v701
        %v883 = vpop.f32.mrf.mxu0
        %v884 = vadd.f32 %v795, %v883
        %v885 = vpop.f32.mrf.mxu0
        %v886 = vadd.f32 %v797, %v885
        %887 = vmatmul.bf16.gmra.mxu0 %v703
        %v888 = vpop.f32.mrf.mxu0
        %v889 = vadd.f32 %v800, %v888
        %v890 = vpop.f32.mrf.mxu0
        %v891 = vadd.f32 %v802, %v890
        %892 = vmatmul.bf16.gmra.mxu0 %v705
        %v893 = vpop.f32.mrf.mxu0
        %v894 = vadd.f32 %v805, %v893
        %v895 = vpop.f32.mrf.mxu0
        %v896 = vadd.f32 %v807, %v895
        %897 = vmatmul.bf16.gmra.mxu0 %v707
        %v898 = vpop.f32.mrf.mxu0
        %v899 = vadd.f32 %v810, %v898
        %v900 = vpop.f32.mrf.mxu0
        %v901 = vadd.f32 %v812, %v900
        %902 = vmatmul.bf16.gmra.mxu0 %v709
        %v903 = vpop.f32.mrf.mxu0
        %v904 = vadd.f32 %v815, %v903
        %v905 = vpop.f32.mrf.mxu0
        %v906 = vadd.f32 %v817, %v905
        %907 = vmatmul.bf16.gmra.mxu0 %v711
        %v908 = vpop.f32.mrf.mxu0
        %v909 = vadd.f32 %v820, %v908
        %v910 = vpop.f32.mrf.mxu0
        %v911 = vadd.f32 %v822, %v910
        %912 = vmatmul.bf16.gmra.mxu0 %v713
        %v913 = vpop.f32.mrf.mxu0
        %v914 = vadd.f32 %v825, %v913
        %v915 = vpop.f32.mrf.mxu0
        %v916 = vadd.f32 %v827, %v915
        %917 = vmatmul.bf16.gmra.mxu0 %v715
        %v918 = vpop.f32.mrf.mxu0
        %v919 = vadd.f32 %v830, %v918
        %v920 = vpop.f32.mrf.mxu0
        %v921 = vadd.f32 %v832, %v920
        %922 = vmatmul.bf16.gmra.mxu0 %v717
        %v923 = vpop.f32.mrf.mxu0
        %v924 = vadd.f32 %v835, %v923
        %v925 = vpop.f32.mrf.mxu0
        %v926 = vadd.f32 %v837, %v925
        %927 = vdwg.mxu0
        %v928 = vmax.f32 %v849, 0.0
        %v929 = vmax.f32 %v851, 0.0
        %v930 = vmax.f32 %v854, 0.0
        %v931 = vmax.f32 %v856, 0.0
        %v932 = vmax.f32 %v859, 0.0
        %v933 = vmax.f32 %v861, 0.0
        %v934 = vmax.f32 %v864, 0.0
        %v935 = vmax.f32 %v866, 0.0
        %v936 = vmax.f32 %v869, 0.0
        %v937 = vmax.f32 %v871, 0.0
        %v938 = vmax.f32 %v874, 0.0
        %v939 = vmax.f32 %v876, 0.0
        %v940 = vmax.f32 %v879, 0.0
        %v941 = vmax.f32 %v881, 0.0
        %v942 = vmax.f32 %v884, 0.0
        %v943 = vmax.f32 %v886, 0.0
        %v944 = vmax.f32 %v889, 0.0
        %v945 = vmax.f32 %v891, 0.0
        %v946 = vmax.f32 %v894, 0.0
        %v947 = vmax.f32 %v896, 0.0
        %v948 = vmax.f32 %v899, 0.0
        %v949 = vmax.f32 %v901, 0.0
        %v950 = vmax.f32 %v904, 0.0
        %v951 = vmax.f32 %v906, 0.0
        %v952 = vmax.f32 %v909, 0.0
        %v953 = vmax.f32 %v911, 0.0
        %v954 = vmax.f32 %v914, 0.0
        %v955 = vmax.f32 %v916, 0.0
        %v956 = vmax.f32 %v919, 0.0
        %v957 = vmax.f32 %v921, 0.0
        %v958 = vmax.f32 %v924, 0.0
        %v959 = vmax.f32 %v926, 0.0
        %p960 = scmp.ne.s32.totalorder %s18, 2
        // Predicated region
        $region57: #{tpu_custom_call.1} parent=35 // pred_check
          %p961 = pneg %p960
        $region58: #{tpu_custom_call.1} parent=35 // pred_check_branch
          %963 = sbr.rel (%p961) target = $region60
        $region59: #{tpu_custom_call.1} parent=35 // pred_region
          %964 = vst [vmem:[#allocation2] sm:$0xff] %v928
          %965 = vst [vmem:[#allocation2 + $0x8] sm:$0xff] %v929
          %966 = vst [vmem:[#allocation2 + $0x10] sm:$0xff] %v930
          %967 = vst [vmem:[#allocation2 + $0x18] sm:$0xff] %v931
          %968 = vst [vmem:[#allocation2 + $0x20] sm:$0xff] %v932
          %969 = vst [vmem:[#allocation2 + $0x28] sm:$0xff] %v933
          %970 = vst [vmem:[#allocation2 + $0x30] sm:$0xff] %v934
          %971 = vst [vmem:[#allocation2 + $0x38] sm:$0xff] %v935
          %972 = vst [vmem:[#allocation2 + $0x40] sm:$0xff] %v936
          %973 = vst [vmem:[#allocation2 + $0x48] sm:$0xff] %v937
          %974 = vst [vmem:[#allocation2 + $0x50] sm:$0xff] %v938
          %975 = vst [vmem:[#allocation2 + $0x58] sm:$0xff] %v939
          %976 = vst [vmem:[#allocation2 + $0x60] sm:$0xff] %v940
          %977 = vst [vmem:[#allocation2 + $0x68] sm:$0xff] %v941
          %978 = vst [vmem:[#allocation2 + $0x70] sm:$0xff] %v942
          %979 = vst [vmem:[#allocation2 + $0x78] sm:$0xff] %v943
          %980 = vst [vmem:[#allocation2 + $0x80] sm:$0xff] %v944
          %981 = vst [vmem:[#allocation2 + $0x88] sm:$0xff] %v945
          %982 = vst [vmem:[#allocation2 + $0x90] sm:$0xff] %v946
          %983 = vst [vmem:[#allocation2 + $0x98] sm:$0xff] %v947
          %984 = vst [vmem:[#allocation2 + $0xa0] sm:$0xff] %v948
          %985 = vst [vmem:[#allocation2 + $0xa8] sm:$0xff] %v949
          %986 = vst [vmem:[#allocation2 + $0xb0] sm:$0xff] %v950
          %987 = vst [vmem:[#allocation2 + $0xb8] sm:$0xff] %v951
          %988 = vst [vmem:[#allocation2 + $0xc0] sm:$0xff] %v952
          %989 = vst [vmem:[#allocation2 + $0xc8] sm:$0xff] %v953
          %990 = vst [vmem:[#allocation2 + $0xd0] sm:$0xff] %v954
          %991 = vst [vmem:[#allocation2 + $0xd8] sm:$0xff] %v955
          %992 = vst [vmem:[#allocation2 + $0xe0] sm:$0xff] %v956
          %993 = vst [vmem:[#allocation2 + $0xe8] sm:$0xff] %v957
          %994 = vst [vmem:[#allocation2 + $0xf0] sm:$0xff] %v958
          %995 = vst [vmem:[#allocation2 + $0xf8] sm:$0xff] %v959
        $region60: #{tpu_custom_call.1} parent=35 // pred_fallthru
          _
        %p996 = scmp.eq.s32.totalorder %s18, 2
        // Predicated region
        $region61: #{tpu_custom_call.1} parent=35 // pred_check
          %p997 = pneg %p996
        $region62: #{tpu_custom_call.1} parent=35 // pred_check_branch
          %999 = sbr.rel (%p997) target = $region64
        $region63: #{tpu_custom_call.1} parent=35 // pred_region
          %v1000 = vmul.f32 %v928, %v928
          %v1001 = vmul.f32 %v929, %v929
          %v1002 = vmul.f32 %v930, %v930
          %v1003 = vmul.f32 %v931, %v931
          %v1004 = vmul.f32 %v932, %v932
          %v1005 = vmul.f32 %v933, %v933
          %v1006 = vmul.f32 %v934, %v934
          %v1007 = vmul.f32 %v935, %v935
          %v1008 = vmul.f32 %v936, %v936
          %v1009 = vmul.f32 %v937, %v937
          %v1010 = vmul.f32 %v938, %v938
          %v1011 = vmul.f32 %v939, %v939
          %v1012 = vmul.f32 %v940, %v940
          %v1013 = vmul.f32 %v941, %v941
          %v1014 = vmul.f32 %v942, %v942
          %v1015 = vmul.f32 %v943, %v943
          %v1016 = vmul.f32 %v944, %v944
          %v1017 = vmul.f32 %v945, %v945
          %v1018 = vmul.f32 %v946, %v946
          %v1019 = vmul.f32 %v947, %v947
          %v1020 = vmul.f32 %v948, %v948
          %v1021 = vmul.f32 %v949, %v949
          %v1022 = vmul.f32 %v950, %v950
          %v1023 = vmul.f32 %v951, %v951
          %v1024 = vmul.f32 %v952, %v952
          %v1025 = vmul.f32 %v953, %v953
          %v1026 = vmul.f32 %v954, %v954
          %v1027 = vmul.f32 %v955, %v955
          %v1028 = vmul.f32 %v956, %v956
          %v1029 = vmul.f32 %v957, %v957
          %v1030 = vmul.f32 %v958, %v958
          %v1031 = vmul.f32 %v959, %v959
          %1032 = vadd.xlane.f32.xlu0 %v1000
          %v1033 = vpop.xlane.xlu0 %1032
          %1034 = vadd.xlane.f32.xlu0 %v1001
          %v1035 = vpop.xlane.xlu0 %1034
          %1036 = vadd.xlane.f32.xlu0 %v1002
          %v1037 = vpop.xlane.xlu0 %1036
          %1038 = vadd.xlane.f32.xlu0 %v1003
          %v1039 = vpop.xlane.xlu0 %1038
          %1040 = vadd.xlane.f32.xlu0 %v1004
          %v1041 = vpop.xlane.xlu0 %1040
          %1042 = vadd.xlane.f32.xlu0 %v1005
          %v1043 = vpop.xlane.xlu0 %1042
          %1044 = vadd.xlane.f32.xlu0 %v1006
          %v1045 = vpop.xlane.xlu0 %1044
          %1046 = vadd.xlane.f32.xlu0 %v1007
          %v1047 = vpop.xlane.xlu0 %1046
          %1048 = vadd.xlane.f32.xlu0 %v1008
          %v1049 = vpop.xlane.xlu0 %1048
          %1050 = vadd.xlane.f32.xlu0 %v1009
          %v1051 = vpop.xlane.xlu0 %1050
          %1052 = vadd.xlane.f32.xlu0 %v1010
          %v1053 = vpop.xlane.xlu0 %1052
          %1054 = vadd.xlane.f32.xlu0 %v1011
          %v1055 = vpop.xlane.xlu0 %1054
          %1056 = vadd.xlane.f32.xlu0 %v1012
          %v1057 = vpop.xlane.xlu0 %1056
          %1058 = vadd.xlane.f32.xlu0 %v1013
          %v1059 = vpop.xlane.xlu0 %1058
          %1060 = vadd.xlane.f32.xlu0 %v1014
          %v1061 = vpop.xlane.xlu0 %1060
          %1062 = vadd.xlane.f32.xlu0 %v1015
          %v1063 = vpop.xlane.xlu0 %1062
          %1064 = vadd.xlane.f32.xlu0 %v1016
          %v1065 = vpop.xlane.xlu0 %1064
          %1066 = vadd.xlane.f32.xlu0 %v1017
          %v1067 = vpop.xlane.xlu0 %1066
          %1068 = vadd.xlane.f32.xlu0 %v1018
          %v1069 = vpop.xlane.xlu0 %1068
          %1070 = vadd.xlane.f32.xlu0 %v1019
          %v1071 = vpop.xlane.xlu0 %1070
          %1072 = vadd.xlane.f32.xlu0 %v1020
          %v1073 = vpop.xlane.xlu0 %1072
          %1074 = vadd.xlane.f32.xlu0 %v1021
          %v1075 = vpop.xlane.xlu0 %1074
          %1076 = vadd.xlane.f32.xlu0 %v1022
          %v1077 = vpop.xlane.xlu0 %1076
          %1078 = vadd.xlane.f32.xlu0 %v1023
          %v1079 = vpop.xlane.xlu0 %1078
          %1080 = vadd.xlane.f32.xlu0 %v1024
          %v1081 = vpop.xlane.xlu0 %1080
          %1082 = vadd.xlane.f32.xlu0 %v1025
          %v1083 = vpop.xlane.xlu0 %1082
          %1084 = vadd.xlane.f32.xlu0 %v1026
          %v1085 = vpop.xlane.xlu0 %1084
          %1086 = vadd.xlane.f32.xlu0 %v1027
          %v1087 = vpop.xlane.xlu0 %1086
          %1088 = vadd.xlane.f32.xlu0 %v1028
          %v1089 = vpop.xlane.xlu0 %1088
          %1090 = vadd.xlane.f32.xlu0 %v1029
          %v1091 = vpop.xlane.xlu0 %1090
          %1092 = vadd.xlane.f32.xlu0 %v1030
          %v1093 = vpop.xlane.xlu0 %1092
          %1094 = vadd.xlane.f32.xlu0 %v1031
          %v1095 = vpop.xlane.xlu0 %1094
          %v1096 = vrsqrt.pop %v1033
          %v1097 = vmul.f32 %v1096, %v1033
          %v1098 = vmul.f32 %v1097, %v1096
          %v1099 = vmul.f32 0.5, %v1098
          %v1100 = vsub.f32 1.5, %v1099
          %v1101 = vmul.f32 %v1096, %v1100
          %v1102 = vmul.f32 %v1033, %v1101
          %vm1103 = vcmp.eq.f32.partialorder %v1033, inf
          %v1104 = vsel %vm1103, %v1033, %v1102
          %vm1105 = vcmp.eq.f32.partialorder %v1033, 0.0
          %v1106 = vand.u32 %v1033, 2147483648
          %v1107 = vsel %vm1105, %v1106, %v1104
          %v1108 = vrsqrt.pop %v1035
          %v1109 = vmul.f32 %v1108, %v1035
          %v1110 = vmul.f32 %v1109, %v1108
          %v1111 = vmul.f32 0.5, %v1110
          %v1112 = vsub.f32 1.5, %v1111
          %v1113 = vmul.f32 %v1108, %v1112
          %v1114 = vmul.f32 %v1035, %v1113
          %vm1115 = vcmp.eq.f32.partialorder %v1035, inf
          %v1116 = vsel %vm1115, %v1035, %v1114
          %vm1117 = vcmp.eq.f32.partialorder %v1035, 0.0
          %v1118 = vand.u32 %v1035, 2147483648
          %v1119 = vsel %vm1117, %v1118, %v1116
          %v1120 = vrsqrt.pop %v1037
          %v1121 = vmul.f32 %v1120, %v1037
          %v1122 = vmul.f32 %v1121, %v1120
          %v1123 = vmul.f32 0.5, %v1122
          %v1124 = vsub.f32 1.5, %v1123
          %v1125 = vmul.f32 %v1120, %v1124
          %v1126 = vmul.f32 %v1037, %v1125
          %vm1127 = vcmp.eq.f32.partialorder %v1037, inf
          %v1128 = vsel %vm1127, %v1037, %v1126
          %vm1129 = vcmp.eq.f32.partialorder %v1037, 0.0
          %v1130 = vand.u32 %v1037, 2147483648
          %v1131 = vsel %vm1129, %v1130, %v1128
          %v1132 = vrsqrt.pop %v1039
          %v1133 = vmul.f32 %v1132, %v1039
          %v1134 = vmul.f32 %v1133, %v1132
          %v1135 = vmul.f32 0.5, %v1134
          %v1136 = vsub.f32 1.5, %v1135
          %v1137 = vmul.f32 %v1132, %v1136
          %v1138 = vmul.f32 %v1039, %v1137
          %vm1139 = vcmp.eq.f32.partialorder %v1039, inf
          %v1140 = vsel %vm1139, %v1039, %v1138
          %vm1141 = vcmp.eq.f32.partialorder %v1039, 0.0
          %v1142 = vand.u32 %v1039, 2147483648
          %v1143 = vsel %vm1141, %v1142, %v1140
          %v1144 = vrsqrt.pop %v1041
          %v1145 = vmul.f32 %v1144, %v1041
          %v1146 = vmul.f32 %v1145, %v1144
          %v1147 = vmul.f32 0.5, %v1146
          %v1148 = vsub.f32 1.5, %v1147
          %v1149 = vmul.f32 %v1144, %v1148
          %v1150 = vmul.f32 %v1041, %v1149
          %vm1151 = vcmp.eq.f32.partialorder %v1041, inf
          %v1152 = vsel %vm1151, %v1041, %v1150
          %vm1153 = vcmp.eq.f32.partialorder %v1041, 0.0
          %v1154 = vand.u32 %v1041, 2147483648
          %v1155 = vsel %vm1153, %v1154, %v1152
          %v1156 = vrsqrt.pop %v1043
          %v1157 = vmul.f32 %v1156, %v1043
          %v1158 = vmul.f32 %v1157, %v1156
          %v1159 = vmul.f32 0.5, %v1158
          %v1160 = vsub.f32 1.5, %v1159
          %v1161 = vmul.f32 %v1156, %v1160
          %v1162 = vmul.f32 %v1043, %v1161
          %vm1163 = vcmp.eq.f32.partialorder %v1043, inf
          %v1164 = vsel %vm1163, %v1043, %v1162
          %vm1165 = vcmp.eq.f32.partialorder %v1043, 0.0
          %v1166 = vand.u32 %v1043, 2147483648
          %v1167 = vsel %vm1165, %v1166, %v1164
          %v1168 = vrsqrt.pop %v1045
          %v1169 = vmul.f32 %v1168, %v1045
          %v1170 = vmul.f32 %v1169, %v1168
          %v1171 = vmul.f32 0.5, %v1170
          %v1172 = vsub.f32 1.5, %v1171
          %v1173 = vmul.f32 %v1168, %v1172
          %v1174 = vmul.f32 %v1045, %v1173
          %vm1175 = vcmp.eq.f32.partialorder %v1045, inf
          %v1176 = vsel %vm1175, %v1045, %v1174
          %vm1177 = vcmp.eq.f32.partialorder %v1045, 0.0
          %v1178 = vand.u32 %v1045, 2147483648
          %v1179 = vsel %vm1177, %v1178, %v1176
          %v1180 = vrsqrt.pop %v1047
          %v1181 = vmul.f32 %v1180, %v1047
          %v1182 = vmul.f32 %v1181, %v1180
          %v1183 = vmul.f32 0.5, %v1182
          %v1184 = vsub.f32 1.5, %v1183
          %v1185 = vmul.f32 %v1180, %v1184
          %v1186 = vmul.f32 %v1047, %v1185
          %vm1187 = vcmp.eq.f32.partialorder %v1047, inf
          %v1188 = vsel %vm1187, %v1047, %v1186
          %vm1189 = vcmp.eq.f32.partialorder %v1047, 0.0
          %v1190 = vand.u32 %v1047, 2147483648
          %v1191 = vsel %vm1189, %v1190, %v1188
          %v1192 = vrsqrt.pop %v1049
          %v1193 = vmul.f32 %v1192, %v1049
          %v1194 = vmul.f32 %v1193, %v1192
          %v1195 = vmul.f32 0.5, %v1194
          %v1196 = vsub.f32 1.5, %v1195
          %v1197 = vmul.f32 %v1192, %v1196
          %v1198 = vmul.f32 %v1049, %v1197
          %vm1199 = vcmp.eq.f32.partialorder %v1049, inf
          %v1200 = vsel %vm1199, %v1049, %v1198
          %vm1201 = vcmp.eq.f32.partialorder %v1049, 0.0
          %v1202 = vand.u32 %v1049, 2147483648
          %v1203 = vsel %vm1201, %v1202, %v1200
          %v1204 = vrsqrt.pop %v1051
          %v1205 = vmul.f32 %v1204, %v1051
          %v1206 = vmul.f32 %v1205, %v1204
          %v1207 = vmul.f32 0.5, %v1206
          %v1208 = vsub.f32 1.5, %v1207
          %v1209 = vmul.f32 %v1204, %v1208
          %v1210 = vmul.f32 %v1051, %v1209
          %vm1211 = vcmp.eq.f32.partialorder %v1051, inf
          %v1212 = vsel %vm1211, %v1051, %v1210
          %vm1213 = vcmp.eq.f32.partialorder %v1051, 0.0
          %v1214 = vand.u32 %v1051, 2147483648
          %v1215 = vsel %vm1213, %v1214, %v1212
          %v1216 = vrsqrt.pop %v1053
          %v1217 = vmul.f32 %v1216, %v1053
          %v1218 = vmul.f32 %v1217, %v1216
          %v1219 = vmul.f32 0.5, %v1218
          %v1220 = vsub.f32 1.5, %v1219
          %v1221 = vmul.f32 %v1216, %v1220
          %v1222 = vmul.f32 %v1053, %v1221
          %vm1223 = vcmp.eq.f32.partialorder %v1053, inf
          %v1224 = vsel %vm1223, %v1053, %v1222
          %vm1225 = vcmp.eq.f32.partialorder %v1053, 0.0
          %v1226 = vand.u32 %v1053, 2147483648
          %v1227 = vsel %vm1225, %v1226, %v1224
          %v1228 = vrsqrt.pop %v1055
          %v1229 = vmul.f32 %v1228, %v1055
          %v1230 = vmul.f32 %v1229, %v1228
          %v1231 = vmul.f32 0.5, %v1230
          %v1232 = vsub.f32 1.5, %v1231
          %v1233 = vmul.f32 %v1228, %v1232
          %v1234 = vmul.f32 %v1055, %v1233
          %vm1235 = vcmp.eq.f32.partialorder %v1055, inf
          %v1236 = vsel %vm1235, %v1055, %v1234
          %vm1237 = vcmp.eq.f32.partialorder %v1055, 0.0
          %v1238 = vand.u32 %v1055, 2147483648
          %v1239 = vsel %vm1237, %v1238, %v1236
          %v1240 = vrsqrt.pop %v1057
          %v1241 = vmul.f32 %v1240, %v1057
          %v1242 = vmul.f32 %v1241, %v1240
          %v1243 = vmul.f32 0.5, %v1242
          %v1244 = vsub.f32 1.5, %v1243
          %v1245 = vmul.f32 %v1240, %v1244
          %v1246 = vmul.f32 %v1057, %v1245
          %vm1247 = vcmp.eq.f32.partialorder %v1057, inf
          %v1248 = vsel %vm1247, %v1057, %v1246
          %vm1249 = vcmp.eq.f32.partialorder %v1057, 0.0
          %v1250 = vand.u32 %v1057, 2147483648
          %v1251 = vsel %vm1249, %v1250, %v1248
          %v1252 = vrsqrt.pop %v1059
          %v1253 = vmul.f32 %v1252, %v1059
          %v1254 = vmul.f32 %v1253, %v1252
          %v1255 = vmul.f32 0.5, %v1254
          %v1256 = vsub.f32 1.5, %v1255
          %v1257 = vmul.f32 %v1252, %v1256
          %v1258 = vmul.f32 %v1059, %v1257
          %vm1259 = vcmp.eq.f32.partialorder %v1059, inf
          %v1260 = vsel %vm1259, %v1059, %v1258
          %vm1261 = vcmp.eq.f32.partialorder %v1059, 0.0
          %v1262 = vand.u32 %v1059, 2147483648
          %v1263 = vsel %vm1261, %v1262, %v1260
          %v1264 = vrsqrt.pop %v1061
          %v1265 = vmul.f32 %v1264, %v1061
          %v1266 = vmul.f32 %v1265, %v1264
          %v1267 = vmul.f32 0.5, %v1266
          %v1268 = vsub.f32 1.5, %v1267
          %v1269 = vmul.f32 %v1264, %v1268
          %v1270 = vmul.f32 %v1061, %v1269
          %vm1271 = vcmp.eq.f32.partialorder %v1061, inf
          %v1272 = vsel %vm1271, %v1061, %v1270
          %vm1273 = vcmp.eq.f32.partialorder %v1061, 0.0
          %v1274 = vand.u32 %v1061, 2147483648
          %v1275 = vsel %vm1273, %v1274, %v1272
          %v1276 = vrsqrt.pop %v1063
          %v1277 = vmul.f32 %v1276, %v1063
          %v1278 = vmul.f32 %v1277, %v1276
          %v1279 = vmul.f32 0.5, %v1278
          %v1280 = vsub.f32 1.5, %v1279
          %v1281 = vmul.f32 %v1276, %v1280
          %v1282 = vmul.f32 %v1063, %v1281
          %vm1283 = vcmp.eq.f32.partialorder %v1063, inf
          %v1284 = vsel %vm1283, %v1063, %v1282
          %vm1285 = vcmp.eq.f32.partialorder %v1063, 0.0
          %v1286 = vand.u32 %v1063, 2147483648
          %v1287 = vsel %vm1285, %v1286, %v1284
          %v1288 = vrsqrt.pop %v1065
          %v1289 = vmul.f32 %v1288, %v1065
          %v1290 = vmul.f32 %v1289, %v1288
          %v1291 = vmul.f32 0.5, %v1290
          %v1292 = vsub.f32 1.5, %v1291
          %v1293 = vmul.f32 %v1288, %v1292
          %v1294 = vmul.f32 %v1065, %v1293
          %vm1295 = vcmp.eq.f32.partialorder %v1065, inf
          %v1296 = vsel %vm1295, %v1065, %v1294
          %vm1297 = vcmp.eq.f32.partialorder %v1065, 0.0
          %v1298 = vand.u32 %v1065, 2147483648
          %v1299 = vsel %vm1297, %v1298, %v1296
          %v1300 = vrsqrt.pop %v1067
          %v1301 = vmul.f32 %v1300, %v1067
          %v1302 = vmul.f32 %v1301, %v1300
          %v1303 = vmul.f32 0.5, %v1302
          %v1304 = vsub.f32 1.5, %v1303
          %v1305 = vmul.f32 %v1300, %v1304
          %v1306 = vmul.f32 %v1067, %v1305
          %vm1307 = vcmp.eq.f32.partialorder %v1067, inf
          %v1308 = vsel %vm1307, %v1067, %v1306
          %vm1309 = vcmp.eq.f32.partialorder %v1067, 0.0
          %v1310 = vand.u32 %v1067, 2147483648
          %v1311 = vsel %vm1309, %v1310, %v1308
          %v1312 = vrsqrt.pop %v1069
          %v1313 = vmul.f32 %v1312, %v1069
          %v1314 = vmul.f32 %v1313, %v1312
          %v1315 = vmul.f32 0.5, %v1314
          %v1316 = vsub.f32 1.5, %v1315
          %v1317 = vmul.f32 %v1312, %v1316
          %v1318 = vmul.f32 %v1069, %v1317
          %vm1319 = vcmp.eq.f32.partialorder %v1069, inf
          %v1320 = vsel %vm1319, %v1069, %v1318
          %vm1321 = vcmp.eq.f32.partialorder %v1069, 0.0
          %v1322 = vand.u32 %v1069, 2147483648
          %v1323 = vsel %vm1321, %v1322, %v1320
          %v1324 = vrsqrt.pop %v1071
          %v1325 = vmul.f32 %v1324, %v1071
          %v1326 = vmul.f32 %v1325, %v1324
          %v1327 = vmul.f32 0.5, %v1326
          %v1328 = vsub.f32 1.5, %v1327
          %v1329 = vmul.f32 %v1324, %v1328
          %v1330 = vmul.f32 %v1071, %v1329
          %vm1331 = vcmp.eq.f32.partialorder %v1071, inf
          %v1332 = vsel %vm1331, %v1071, %v1330
          %vm1333 = vcmp.eq.f32.partialorder %v1071, 0.0
          %v1334 = vand.u32 %v1071, 2147483648
          %v1335 = vsel %vm1333, %v1334, %v1332
          %v1336 = vrsqrt.pop %v1073
          %v1337 = vmul.f32 %v1336, %v1073
          %v1338 = vmul.f32 %v1337, %v1336
          %v1339 = vmul.f32 0.5, %v1338
          %v1340 = vsub.f32 1.5, %v1339
          %v1341 = vmul.f32 %v1336, %v1340
          %v1342 = vmul.f32 %v1073, %v1341
          %vm1343 = vcmp.eq.f32.partialorder %v1073, inf
          %v1344 = vsel %vm1343, %v1073, %v1342
          %vm1345 = vcmp.eq.f32.partialorder %v1073, 0.0
          %v1346 = vand.u32 %v1073, 2147483648
          %v1347 = vsel %vm1345, %v1346, %v1344
          %v1348 = vrsqrt.pop %v1075
          %v1349 = vmul.f32 %v1348, %v1075
          %v1350 = vmul.f32 %v1349, %v1348
          %v1351 = vmul.f32 0.5, %v1350
          %v1352 = vsub.f32 1.5, %v1351
          %v1353 = vmul.f32 %v1348, %v1352
          %v1354 = vmul.f32 %v1075, %v1353
          %vm1355 = vcmp.eq.f32.partialorder %v1075, inf
          %v1356 = vsel %vm1355, %v1075, %v1354
          %vm1357 = vcmp.eq.f32.partialorder %v1075, 0.0
          %v1358 = vand.u32 %v1075, 2147483648
          %v1359 = vsel %vm1357, %v1358, %v1356
          %v1360 = vrsqrt.pop %v1077
          %v1361 = vmul.f32 %v1360, %v1077
          %v1362 = vmul.f32 %v1361, %v1360
          %v1363 = vmul.f32 0.5, %v1362
          %v1364 = vsub.f32 1.5, %v1363
          %v1365 = vmul.f32 %v1360, %v1364
          %v1366 = vmul.f32 %v1077, %v1365
          %vm1367 = vcmp.eq.f32.partialorder %v1077, inf
          %v1368 = vsel %vm1367, %v1077, %v1366
          %vm1369 = vcmp.eq.f32.partialorder %v1077, 0.0
          %v1370 = vand.u32 %v1077, 2147483648
          %v1371 = vsel %vm1369, %v1370, %v1368
          %v1372 = vrsqrt.pop %v1079
          %v1373 = vmul.f32 %v1372, %v1079
          %v1374 = vmul.f32 %v1373, %v1372
          %v1375 = vmul.f32 0.5, %v1374
          %v1376 = vsub.f32 1.5, %v1375
          %v1377 = vmul.f32 %v1372, %v1376
          %v1378 = vmul.f32 %v1079, %v1377
          %vm1379 = vcmp.eq.f32.partialorder %v1079, inf
          %v1380 = vsel %vm1379, %v1079, %v1378
          %vm1381 = vcmp.eq.f32.partialorder %v1079, 0.0
          %v1382 = vand.u32 %v1079, 2147483648
          %v1383 = vsel %vm1381, %v1382, %v1380
          %v1384 = vrsqrt.pop %v1081
          %v1385 = vmul.f32 %v1384, %v1081
          %v1386 = vmul.f32 %v1385, %v1384
          %v1387 = vmul.f32 0.5, %v1386
          %v1388 = vsub.f32 1.5, %v1387
          %v1389 = vmul.f32 %v1384, %v1388
          %v1390 = vmul.f32 %v1081, %v1389
          %vm1391 = vcmp.eq.f32.partialorder %v1081, inf
          %v1392 = vsel %vm1391, %v1081, %v1390
          %vm1393 = vcmp.eq.f32.partialorder %v1081, 0.0
          %v1394 = vand.u32 %v1081, 2147483648
          %v1395 = vsel %vm1393, %v1394, %v1392
          %v1396 = vrsqrt.pop %v1083
          %v1397 = vmul.f32 %v1396, %v1083
          %v1398 = vmul.f32 %v1397, %v1396
          %v1399 = vmul.f32 0.5, %v1398
          %v1400 = vsub.f32 1.5, %v1399
          %v1401 = vmul.f32 %v1396, %v1400
          %v1402 = vmul.f32 %v1083, %v1401
          %vm1403 = vcmp.eq.f32.partialorder %v1083, inf
          %v1404 = vsel %vm1403, %v1083, %v1402
          %vm1405 = vcmp.eq.f32.partialorder %v1083, 0.0
          %v1406 = vand.u32 %v1083, 2147483648
          %v1407 = vsel %vm1405, %v1406, %v1404
          %v1408 = vrsqrt.pop %v1085
          %v1409 = vmul.f32 %v1408, %v1085
          %v1410 = vmul.f32 %v1409, %v1408
          %v1411 = vmul.f32 0.5, %v1410
          %v1412 = vsub.f32 1.5, %v1411
          %v1413 = vmul.f32 %v1408, %v1412
          %v1414 = vmul.f32 %v1085, %v1413
          %vm1415 = vcmp.eq.f32.partialorder %v1085, inf
          %v1416 = vsel %vm1415, %v1085, %v1414
          %vm1417 = vcmp.eq.f32.partialorder %v1085, 0.0
          %v1418 = vand.u32 %v1085, 2147483648
          %v1419 = vsel %vm1417, %v1418, %v1416
          %v1420 = vrsqrt.pop %v1087
          %v1421 = vmul.f32 %v1420, %v1087
          %v1422 = vmul.f32 %v1421, %v1420
          %v1423 = vmul.f32 0.5, %v1422
          %v1424 = vsub.f32 1.5, %v1423
          %v1425 = vmul.f32 %v1420, %v1424
          %v1426 = vmul.f32 %v1087, %v1425
          %vm1427 = vcmp.eq.f32.partialorder %v1087, inf
          %v1428 = vsel %vm1427, %v1087, %v1426
          %vm1429 = vcmp.eq.f32.partialorder %v1087, 0.0
          %v1430 = vand.u32 %v1087, 2147483648
          %v1431 = vsel %vm1429, %v1430, %v1428
          %v1432 = vrsqrt.pop %v1089
          %v1433 = vmul.f32 %v1432, %v1089
          %v1434 = vmul.f32 %v1433, %v1432
          %v1435 = vmul.f32 0.5, %v1434
          %v1436 = vsub.f32 1.5, %v1435
          %v1437 = vmul.f32 %v1432, %v1436
          %v1438 = vmul.f32 %v1089, %v1437
          %vm1439 = vcmp.eq.f32.partialorder %v1089, inf
          %v1440 = vsel %vm1439, %v1089, %v1438
          %vm1441 = vcmp.eq.f32.partialorder %v1089, 0.0
          %v1442 = vand.u32 %v1089, 2147483648
          %v1443 = vsel %vm1441, %v1442, %v1440
          %v1444 = vrsqrt.pop %v1091
          %v1445 = vmul.f32 %v1444, %v1091
          %v1446 = vmul.f32 %v1445, %v1444
          %v1447 = vmul.f32 0.5, %v1446
          %v1448 = vsub.f32 1.5, %v1447
          %v1449 = vmul.f32 %v1444, %v1448
          %v1450 = vmul.f32 %v1091, %v1449
          %vm1451 = vcmp.eq.f32.partialorder %v1091, inf
          %v1452 = vsel %vm1451, %v1091, %v1450
          %vm1453 = vcmp.eq.f32.partialorder %v1091, 0.0
          %v1454 = vand.u32 %v1091, 2147483648
          %v1455 = vsel %vm1453, %v1454, %v1452
          %v1456 = vrsqrt.pop %v1093
          %v1457 = vmul.f32 %v1456, %v1093
          %v1458 = vmul.f32 %v1457, %v1456
          %v1459 = vmul.f32 0.5, %v1458
          %v1460 = vsub.f32 1.5, %v1459
          %v1461 = vmul.f32 %v1456, %v1460
          %v1462 = vmul.f32 %v1093, %v1461
          %vm1463 = vcmp.eq.f32.partialorder %v1093, inf
          %v1464 = vsel %vm1463, %v1093, %v1462
          %vm1465 = vcmp.eq.f32.partialorder %v1093, 0.0
          %v1466 = vand.u32 %v1093, 2147483648
          %v1467 = vsel %vm1465, %v1466, %v1464
          %v1468 = vrsqrt.pop %v1095
          %v1469 = vmul.f32 %v1468, %v1095
          %v1470 = vmul.f32 %v1469, %v1468
          %v1471 = vmul.f32 0.5, %v1470
          %v1472 = vsub.f32 1.5, %v1471
          %v1473 = vmul.f32 %v1468, %v1472
          %v1474 = vmul.f32 %v1095, %v1473
          %vm1475 = vcmp.eq.f32.partialorder %v1095, inf
          %v1476 = vsel %vm1475, %v1095, %v1474
          %vm1477 = vcmp.eq.f32.partialorder %v1095, 0.0
          %v1478 = vand.u32 %v1095, 2147483648
          %v1479 = vsel %vm1477, %v1478, %v1476
          %v1480 = vmax.f32 %v1107, 1e-12
          %v1481 = vmax.f32 %v1119, 1e-12
          %v1482 = vmax.f32 %v1131, 1e-12
          %v1483 = vmax.f32 %v1143, 1e-12
          %v1484 = vmax.f32 %v1155, 1e-12
          %v1485 = vmax.f32 %v1167, 1e-12
          %v1486 = vmax.f32 %v1179, 1e-12
          %v1487 = vmax.f32 %v1191, 1e-12
          %v1488 = vmax.f32 %v1203, 1e-12
          %v1489 = vmax.f32 %v1215, 1e-12
          %v1490 = vmax.f32 %v1227, 1e-12
          %v1491 = vmax.f32 %v1239, 1e-12
          %v1492 = vmax.f32 %v1251, 1e-12
          %v1493 = vmax.f32 %v1263, 1e-12
          %v1494 = vmax.f32 %v1275, 1e-12
          %v1495 = vmax.f32 %v1287, 1e-12
          %v1496 = vmax.f32 %v1299, 1e-12
          %v1497 = vmax.f32 %v1311, 1e-12
          %v1498 = vmax.f32 %v1323, 1e-12
          %v1499 = vmax.f32 %v1335, 1e-12
          %v1500 = vmax.f32 %v1347, 1e-12
          %v1501 = vmax.f32 %v1359, 1e-12
          %v1502 = vmax.f32 %v1371, 1e-12
          %v1503 = vmax.f32 %v1383, 1e-12
          %v1504 = vmax.f32 %v1395, 1e-12
          %v1505 = vmax.f32 %v1407, 1e-12
          %v1506 = vmax.f32 %v1419, 1e-12
          %v1507 = vmax.f32 %v1431, 1e-12
          %v1508 = vmax.f32 %v1443, 1e-12
          %v1509 = vmax.f32 %v1455, 1e-12
          %v1510 = vmax.f32 %v1467, 1e-12
          %v1511 = vmax.f32 %v1479, 1e-12
          %v1512 = vrcp.pop %v1480
          %v1513 = vrcp.pop %v1481
          %v1514 = vrcp.pop %v1482
          %v1515 = vrcp.pop %v1483
          %v1516 = vrcp.pop %v1484
          %v1517 = vrcp.pop %v1485
          %v1518 = vrcp.pop %v1486
          %v1519 = vrcp.pop %v1487
          %v1520 = vrcp.pop %v1488
          %v1521 = vrcp.pop %v1489
          %v1522 = vrcp.pop %v1490
          %v1523 = vrcp.pop %v1491
          %v1524 = vrcp.pop %v1492
          %v1525 = vrcp.pop %v1493
          %v1526 = vrcp.pop %v1494
          %v1527 = vrcp.pop %v1495
          %v1528 = vrcp.pop %v1496
          %v1529 = vrcp.pop %v1497
          %v1530 = vrcp.pop %v1498
          %v1531 = vrcp.pop %v1499
          %v1532 = vrcp.pop %v1500
          %v1533 = vrcp.pop %v1501
          %v1534 = vrcp.pop %v1502
          %v1535 = vrcp.pop %v1503
          %v1536 = vrcp.pop %v1504
          %v1537 = vrcp.pop %v1505
          %v1538 = vrcp.pop %v1506
          %v1539 = vrcp.pop %v1507
          %v1540 = vrcp.pop %v1508
          %v1541 = vrcp.pop %v1509
          %v1542 = vrcp.pop %v1510
          %v1543 = vrcp.pop %v1511
          %v1544 = vmul.f32 %v928, %v1512
          %v1545 = vmul.f32 %v929, %v1513
          %v1546 = vmul.f32 %v930, %v1514
          %v1547 = vmul.f32 %v931, %v1515
          %v1548 = vmul.f32 %v932, %v1516
          %v1549 = vmul.f32 %v933, %v1517
          %v1550 = vmul.f32 %v934, %v1518
          %v1551 = vmul.f32 %v935, %v1519
          %v1552 = vmul.f32 %v936, %v1520
          %v1553 = vmul.f32 %v937, %v1521
          %v1554 = vmul.f32 %v938, %v1522
          %v1555 = vmul.f32 %v939, %v1523
          %v1556 = vmul.f32 %v940, %v1524
          %v1557 = vmul.f32 %v941, %v1525
          %v1558 = vmul.f32 %v942, %v1526
          %v1559 = vmul.f32 %v943, %v1527
          %v1560 = vmul.f32 %v944, %v1528
          %v1561 = vmul.f32 %v945, %v1529
          %v1562 = vmul.f32 %v946, %v1530
          %v1563 = vmul.f32 %v947, %v1531
          %v1564 = vmul.f32 %v948, %v1532
          %v1565 = vmul.f32 %v949, %v1533
          %v1566 = vmul.f32 %v950, %v1534
          %v1567 = vmul.f32 %v951, %v1535
          %v1568 = vmul.f32 %v952, %v1536
          %v1569 = vmul.f32 %v953, %v1537
          %v1570 = vmul.f32 %v954, %v1538
          %v1571 = vmul.f32 %v955, %v1539
          %v1572 = vmul.f32 %v956, %v1540
          %v1573 = vmul.f32 %v957, %v1541
          %v1574 = vmul.f32 %v958, %v1542
          %v1575 = vmul.f32 %v959, %v1543
          %1576 = vst [vmem:[#allocation10] sm:$0xff] %v1544
          %1577 = vst [vmem:[#allocation10 + $0x8] sm:$0xff] %v1545
          %1578 = vst [vmem:[#allocation10 + $0x10] sm:$0xff] %v1546
          %1579 = vst [vmem:[#allocation10 + $0x18] sm:$0xff] %v1547
          %1580 = vst [vmem:[#allocation10 + $0x20] sm:$0xff] %v1548
          %1581 = vst [vmem:[#allocation10 + $0x28] sm:$0xff] %v1549
          %1582 = vst [vmem:[#allocation10 + $0x30] sm:$0xff] %v1550
          %1583 = vst [vmem:[#allocation10 + $0x38] sm:$0xff] %v1551
          %1584 = vst [vmem:[#allocation10 + $0x40] sm:$0xff] %v1552
          %1585 = vst [vmem:[#allocation10 + $0x48] sm:$0xff] %v1553
          %1586 = vst [vmem:[#allocation10 + $0x50] sm:$0xff] %v1554
          %1587 = vst [vmem:[#allocation10 + $0x58] sm:$0xff] %v1555
          %1588 = vst [vmem:[#allocation10 + $0x60] sm:$0xff] %v1556
          %1589 = vst [vmem:[#allocation10 + $0x68] sm:$0xff] %v1557
          %1590 = vst [vmem:[#allocation10 + $0x70] sm:$0xff] %v1558
          %1591 = vst [vmem:[#allocation10 + $0x78] sm:$0xff] %v1559
          %1592 = vst [vmem:[#allocation10 + $0x80] sm:$0xff] %v1560
          %1593 = vst [vmem:[#allocation10 + $0x88] sm:$0xff] %v1561
          %1594 = vst [vmem:[#allocation10 + $0x90] sm:$0xff] %v1562
          %1595 = vst [vmem:[#allocation10 + $0x98] sm:$0xff] %v1563
          %1596 = vst [vmem:[#allocation10 + $0xa0] sm:$0xff] %v1564
          %1597 = vst [vmem:[#allocation10 + $0xa8] sm:$0xff] %v1565
          %1598 = vst [vmem:[#allocation10 + $0xb0] sm:$0xff] %v1566
          %1599 = vst [vmem:[#allocation10 + $0xb8] sm:$0xff] %v1567
          %1600 = vst [vmem:[#allocation10 + $0xc0] sm:$0xff] %v1568
          %1601 = vst [vmem:[#allocation10 + $0xc8] sm:$0xff] %v1569
          %1602 = vst [vmem:[#allocation10 + $0xd0] sm:$0xff] %v1570
          %1603 = vst [vmem:[#allocation10 + $0xd8] sm:$0xff] %v1571
          %1604 = vst [vmem:[#allocation10 + $0xe0] sm:$0xff] %v1572
          %1605 = vst [vmem:[#allocation10 + $0xe8] sm:$0xff] %v1573
          %1606 = vst [vmem:[#allocation10 + $0xf0] sm:$0xff] %v1574
          %1607 = vst [vmem:[#allocation10 + $0xf8] sm:$0xff] %v1575
        $region64: #{tpu_custom_call.1} parent=35 // pred_fallthru
          _
        // Predicated region
        $region65: #{tpu_custom_call.1} parent=35 // pred_check
          %p1608 = pneg %p125
        $region66: #{tpu_custom_call.1} parent=35 // pred_check_branch
          %1610 = sbr.rel (%p1608) target = $region68
        $region67: #{tpu_custom_call.1} parent=35 // pred_region
          %1612 = vsyncadd [#allocation5], 0
          %s1613 = sshll.u32 [#allocation10], 4
          %s1614 = int_to_ptr.vmem [resolvable:$true] %s1613
          %s1615 = sshll.u32 %s4, 4
          %s1616 = int_to_ptr.hbm [resolvable:$true] %s1615
          %1621 = dma.vmem_to_hbm [thread:$0]  %s1614, 4096, %s1616, [#allocation5], 128, 128, 8
        $region68: #{tpu_custom_call.1} parent=35 // pred_fallthru
          _
        // Predicated region
        $region69: #{tpu_custom_call.1} parent=35 // pred_check
          %p1622 = pneg %p125
        $region70: #{tpu_custom_call.1} parent=35 // pred_check_branch
          %1624 = sbr.rel (%p1622) target = $region72
        $region71: #{tpu_custom_call.1} parent=35 // pred_region
          %1626 = dma.done [#allocation5], 4096
        $region72: #{tpu_custom_call.1} parent=35 // pred_fallthru
          _
      $region36: #{tpu_custom_call.1} parent=5 // pred_fallthru
        _
      %p1627 = scmp.le.s32.totalorder 2, %s13
      // Predicated region
      $region73: #{tpu_custom_call.1} parent=5 // pred_check
        %p1628 = pneg %p1627
      $region74: #{tpu_custom_call.1} parent=5 // pred_check_branch
        %1630 = sbr.rel (%p1628) target = $region76
      $region75: #{tpu_custom_call.1} parent=5 // pred_region
        %s1631 = ssub.s32 %s13, 2
      $region76: #{tpu_custom_call.1} parent=5 // pred_fallthru
        _
    $region6: #{tpu_custom_call.1} parent=1 // loop_footer
      %s17 = sadd.s32 1, %s13
    $region7: #{tpu_custom_call.1} parent=1 // loop_footer_branch
      %12 = sbr.rel target = $region3
    $region8: #{tpu_custom_call.1} parent=1 // loop_exit
      _
    %1632 = vsyncpa [#allocation4], 1
    %s1633 = scalar_lea.sflag [#allocation4], 1
    %1634 = vsyncpa %s1633, 1
    %1635 = vsyncpa [#allocation7], 1
    %1636 = vsyncpa [#allocation5], 1
    %s1637 = scalar_lea.sflag [#allocation5], 1
    %1638 = vsyncpa %s1637, 1

</llo_original>
